<compile_context>
chip_gen: v7x
topology: tpu7x:2x2x1
jax: 0.10.0
libtpu: 0.0.40
codegen_flags: <defaults>
</compile_context>

<pallas_src>
import functools

import jax
import jax.numpy as jnp
from jax.experimental import pallas as pl
from jax.experimental.pallas import tpu as pltpu


LEAKY_SLOPE = 0.01  # nn.LeakyReLU default negative_slope


def _leaky_relu(v):
    return jnp.where(v > 0, v, LEAKY_SLOPE * v)


def _round_up(a, m):
    return (a + m - 1) // m * m


def autoencoder_kernel(x_ref,
                       w1_ref, b1_ref,
                       w2_ref, b2_ref,
                       w3_ref, b3_ref,
                       w4_ref, b4_ref,
                       o_ref):
    cd = x_ref.dtype  # compute (matmul operand) dtype: bf16 or f32

    x = x_ref[...]

    # encoder: n -> n/2 -> n/8  (LeakyReLU after each), f32 accumulation
    h = jnp.dot(x, w1_ref[...], preferred_element_type=jnp.float32) + b1_ref[...]
    h = _leaky_relu(h)
    h = jnp.dot(h.astype(cd), w2_ref[...],
                preferred_element_type=jnp.float32) + b2_ref[...]
    h = _leaky_relu(h)

    # decoder: n/8 -> n/2 (LeakyReLU) -> n (no activation)
    h = jnp.dot(h.astype(cd), w3_ref[...],
                preferred_element_type=jnp.float32) + b3_ref[...]
    h = _leaky_relu(h)
    y = jnp.dot(h.astype(cd), w4_ref[...],
                preferred_element_type=jnp.float32) + b4_ref[...]

    o_ref[...] = y.astype(o_ref.dtype)


@functools.partial(jax.jit, static_argnames=("batch_tile", "compute_dtype"))
def simple_autoencoder_forward(x, params, *, batch_tile=512,
                               compute_dtype=jnp.bfloat16):
    """x: (B, n_features) f32. params: w1..w4 stored (in, out), b1..b4 (1, out)."""
    B, n = x.shape
    out_dtype = x.dtype
    d1, d2 = n // 2, n // 8

    # --- batch tiling: MXU-aligned, adapted to small batches, batch padded ---
    min_rows = 16 if jnp.dtype(compute_dtype) == jnp.dtype(jnp.bfloat16) else 8
    tile = min(batch_tile, _round_up(B, min_rows))
    tile = max(min_rows, _round_up(tile, min_rows))
    B_pad = _round_up(B, tile)
    if B_pad != B:
        x = jnp.pad(x, ((0, B_pad - B), (0, 0)))

    # --- cast streamed operands; biases / elementwise stay f32 ---
    x_c = x.astype(compute_dtype)
    ws = [params[f"w{i}"].astype(compute_dtype) for i in range(1, 5)]
    bs = [params[f"b{i}"].astype(jnp.float32) for i in range(1, 5)]

    def full_spec(arr):
        # Whole (small) parameter array, constant index map -> DMA'd once,
        # resident in VMEM for every grid step.
        return pl.BlockSpec(arr.shape, lambda i: (0, 0))

    grid = (B_pad // tile,)

    # Advisory cost estimate for XLA scheduling around the custom call.
    flops = 2 * B_pad * (n * d1 + d1 * d2 + d2 * d1 + d1 * n)
    param_bytes = sum(int(a.size) * a.dtype.itemsize for a in ws + bs)
    bytes_accessed = (B_pad * n * jnp.dtype(compute_dtype).itemsize
                      + B_pad * n * jnp.dtype(out_dtype).itemsize
                      + param_bytes)
    cost = pl.CostEstimate(flops=flops, transcendentals=0,
                           bytes_accessed=bytes_accessed)

    out = pl.pallas_call(
        autoencoder_kernel,
        out_shape=jax.ShapeDtypeStruct((B_pad, n), out_dtype),
        grid_spec=pltpu.PrefetchScalarGridSpec(
            num_scalar_prefetch=0,
            grid=grid,
            in_specs=[
                pl.BlockSpec((tile, n), lambda i: (i, 0)),  # x tile (streamed)
                full_spec(ws[0]), full_spec(bs[0]),
                full_spec(ws[1]), full_spec(bs[1]),
                full_spec(ws[2]), full_spec(bs[2]),
                full_spec(ws[3]), full_spec(bs[3]),
            ],
            out_specs=pl.BlockSpec((tile, n), lambda i: (i, 0)),
        ),
        compiler_params=pltpu.CompilerParams(
            dimension_semantics=("parallel",),
            vmem_limit_bytes=32 * 1024 * 1024,
        ),
        cost_estimate=cost,
    )(x_c, ws[0], bs[0], ws[1], bs[1], ws[2], bs[2], ws[3], bs[3])

    if B_pad != B:
        out = out[:B]
    return out


def init_params(key, n_features):
    """Deterministic init mimicking PyTorch Linear default: U(-1/sqrt(in), 1/sqrt(in))."""
    dims = [
        (n_features, n_features // 2),
        (n_features // 2, n_features // 8),
        (n_features // 8, n_features // 2),
        (n_features // 2, n_features),
    ]
    params = {}
    keys = jax.random.split(key, 2 * len(dims))
    for idx, (fan_in, fan_out) in enumerate(dims):
        bound = 1.0 / jnp.sqrt(jnp.float32(fan_in))
        w = jax.random.uniform(keys[2 * idx], (fan_in, fan_out),
                               minval=-bound, maxval=bound, dtype=jnp.float32)
        b = jax.random.uniform(keys[2 * idx + 1], (1, fan_out),
                               minval=-bound, maxval=bound, dtype=jnp.float32)
        params[f"w{idx + 1}"] = w
        params[f"b{idx + 1}"] = b
    return params


def reference_forward(x, params, compute_dtype=jnp.float32):
    """Pure-JAX reference with the same operand quantization as the kernel."""
    cd = compute_dtype

    def lin(h, w, b):
        return jnp.dot(h.astype(cd), w.astype(cd),
                       preferred_element_type=jnp.float32) + b

    h = _leaky_relu(lin(x, params["w1"], params["b1"]))
    h = _leaky_relu(lin(h, params["w2"], params["b2"]))
    h = _leaky_relu(lin(h, params["w3"], params["b3"]))
    return lin(h, params["w4"], params["b4"])


if __name__ == "__main__":
    key = jax.random.PRNGKey(0)
    k_x, k_p = jax.random.split(key)

    batch = 512          # grid of 2 at batch_tile=256 -> both v7x TCs busy
    n_features = 128     # n/2 = 64, n/8 = 16

    x = jax.random.normal(k_x, (batch, n_features), dtype=jnp.float32)
    params = init_params(k_p, n_features)

    # 1) f32 compute path vs f32 reference (tight tolerance).
    out_f32 = simple_autoencoder_forward(x, params, batch_tile=256,
                                         compute_dtype=jnp.float32)
    out_f32 = jax.block_until_ready(out_f32)
    ref_f32 = reference_forward(x, params, compute_dtype=jnp.float32)
    assert out_f32.shape == (batch, n_features)
    assert jnp.allclose(out_f32, ref_f32, atol=1e-4, rtol=1e-4), \
        "f32 path mismatch vs. reference"

    # 2) default bf16 streaming path vs bf16-quantized reference.
    out_bf16 = simple_autoencoder_forward(x, params, batch_tile=256)
    out_bf16 = jax.block_until_ready(out_bf16)
    ref_bf16 = reference_forward(x, params, compute_dtype=jnp.bfloat16)
    assert out_bf16.shape == (batch, n_features)
    assert jnp.allclose(out_bf16, ref_bf16, atol=5e-3, rtol=5e-3), \
        "bf16 path mismatch vs. reference"
    assert jnp.allclose(out_bf16, ref_f32, atol=5e-2, rtol=5e-2), \
        "bf16 path too far from f32 reference"

    # 3) non-tile-multiple batch (exercises padding / adaptive tile).
    out_odd = simple_autoencoder_forward(x[:37], params)
    out_odd = jax.block_until_ready(out_odd)
    assert out_odd.shape == (37, n_features)
    assert jnp.allclose(out_odd, ref_bf16[:37], atol=5e-3, rtol=5e-3), \
        "padded-batch path mismatch vs. reference"

    print("KERNEL_OK")
</pallas_src>

<mosaic_0001>
module attributes {stable_mosaic.version = 11 : i64} {
  func.func @autoencoder_kernel(%arg0: i32, %arg1: memref<256x128xf32, #tpu.memory_space<vmem>>, %arg2: memref<128x64xf32, #tpu.memory_space<vmem>>, %arg3: memref<1x64xf32, #tpu.memory_space<vmem>>, %arg4: memref<64x16xf32, #tpu.memory_space<vmem>>, %arg5: memref<1x16xf32, #tpu.memory_space<vmem>>, %arg6: memref<16x64xf32, #tpu.memory_space<vmem>>, %arg7: memref<1x64xf32, #tpu.memory_space<vmem>>, %arg8: memref<64x128xf32, #tpu.memory_space<vmem>>, %arg9: memref<1x128xf32, #tpu.memory_space<vmem>>, %arg10: memref<256x128xf32, #tpu.memory_space<vmem>>) attributes {dimension_semantics = [#tpu.dimension_semantics<parallel>], iteration_bounds = array<i64: 2>, scalar_prefetch = 0 : i64, scratch_operands = 0 : i64, tpu.core_type = #tpu.core_type<tc>, window_params = [{transform_indices = @transform_0, window_bounds = array<i64: 256, 128>}, {pipeline_mode = #tpu.pipeline_mode<synchronous>, transform_indices = @transform_1, window_bounds = array<i64: 128, 64>}, {pipeline_mode = #tpu.pipeline_mode<synchronous>, transform_indices = @transform_2, window_bounds = array<i64: 1, 64>}, {pipeline_mode = #tpu.pipeline_mode<synchronous>, transform_indices = @transform_3, window_bounds = array<i64: 64, 16>}, {pipeline_mode = #tpu.pipeline_mode<synchronous>, transform_indices = @transform_4, window_bounds = array<i64: 1, 16>}, {pipeline_mode = #tpu.pipeline_mode<synchronous>, transform_indices = @transform_5, window_bounds = array<i64: 16, 64>}, {pipeline_mode = #tpu.pipeline_mode<synchronous>, transform_indices = @transform_6, window_bounds = array<i64: 1, 64>}, {pipeline_mode = #tpu.pipeline_mode<synchronous>, transform_indices = @transform_7, window_bounds = array<i64: 64, 128>}, {pipeline_mode = #tpu.pipeline_mode<synchronous>, transform_indices = @transform_8, window_bounds = array<i64: 1, 128>}, {transform_indices = @transform_9, window_bounds = array<i64: 256, 128>}]} {
    %c0 = arith.constant 0 : index
    %c0_0 = arith.constant 0 : index
    %0 = vector.load %arg1[%c0, %c0_0] : memref<256x128xf32, #tpu.memory_space<vmem>>, vector<256x128xf32>
    %c0_1 = arith.constant 0 : index
    %c0_2 = arith.constant 0 : index
    %1 = vector.load %arg2[%c0_1, %c0_2] : memref<128x64xf32, #tpu.memory_space<vmem>>, vector<128x64xf32>
    %cst = arith.constant dense<0.000000e+00> : vector<256x64xf32>
    %2 = tpu.matmul %0, %1, %cst {dimension_numbers = #tpu.dot_dimension_numbers<[1], [0], [0], [1], [0, 0, 1, 1], [], []>} : vector<256x128xf32>, vector<128x64xf32>, vector<256x64xf32> -> vector<256x64xf32>
    %c0_3 = arith.constant 0 : index
    %c0_4 = arith.constant 0 : index
    %3 = vector.load %arg3[%c0_3, %c0_4] : memref<1x64xf32, #tpu.memory_space<vmem>>, vector<1x64xf32>
    %4 = vector.broadcast %3 : vector<1x64xf32> to vector<256x64xf32>
    %5 = arith.addf %2, %4 : vector<256x64xf32>
    %cst_5 = arith.constant 0.000000e+00 : f32
    %6 = vector.broadcast %cst_5 : f32 to vector<256x64xf32>
    %7 = arith.cmpf ogt, %5, %6 : vector<256x64xf32>
    %cst_6 = arith.constant 0.00999999977 : f32
    %8 = vector.broadcast %cst_6 : f32 to vector<256x64xf32>
    %9 = arith.mulf %8, %5 : vector<256x64xf32>
    %10 = arith.select %7, %5, %9 : vector<256x64xi1>, vector<256x64xf32>
    %c0_7 = arith.constant 0 : index
    %c0_8 = arith.constant 0 : index
    %11 = vector.load %arg4[%c0_7, %c0_8] : memref<64x16xf32, #tpu.memory_space<vmem>>, vector<64x16xf32>
    %cst_9 = arith.constant dense<0.000000e+00> : vector<256x16xf32>
    %12 = tpu.matmul %10, %11, %cst_9 {dimension_numbers = #tpu.dot_dimension_numbers<[1], [0], [0], [1], [0, 0, 1, 1], [], []>} : vector<256x64xf32>, vector<64x16xf32>, vector<256x16xf32> -> vector<256x16xf32>
    %c0_10 = arith.constant 0 : index
    %c0_11 = arith.constant 0 : index
    %13 = vector.load %arg5[%c0_10, %c0_11] : memref<1x16xf32, #tpu.memory_space<vmem>>, vector<1x16xf32>
    %14 = vector.broadcast %13 : vector<1x16xf32> to vector<256x16xf32>
    %15 = arith.addf %12, %14 : vector<256x16xf32>
    %cst_12 = arith.constant 0.000000e+00 : f32
    %16 = vector.broadcast %cst_12 : f32 to vector<256x16xf32>
    %17 = arith.cmpf ogt, %15, %16 : vector<256x16xf32>
    %cst_13 = arith.constant 0.00999999977 : f32
    %18 = vector.broadcast %cst_13 : f32 to vector<256x16xf32>
    %19 = arith.mulf %18, %15 : vector<256x16xf32>
    %20 = arith.select %17, %15, %19 : vector<256x16xi1>, vector<256x16xf32>
    %c0_14 = arith.constant 0 : index
    %c0_15 = arith.constant 0 : index
    %21 = vector.load %arg6[%c0_14, %c0_15] : memref<16x64xf32, #tpu.memory_space<vmem>>, vector<16x64xf32>
    %cst_16 = arith.constant dense<0.000000e+00> : vector<256x64xf32>
    %22 = tpu.matmul %20, %21, %cst_16 {dimension_numbers = #tpu.dot_dimension_numbers<[1], [0], [0], [1], [0, 0, 1, 1], [], []>} : vector<256x16xf32>, vector<16x64xf32>, vector<256x64xf32> -> vector<256x64xf32>
    %c0_17 = arith.constant 0 : index
    %c0_18 = arith.constant 0 : index
    %23 = vector.load %arg7[%c0_17, %c0_18] : memref<1x64xf32, #tpu.memory_space<vmem>>, vector<1x64xf32>
    %24 = vector.broadcast %23 : vector<1x64xf32> to vector<256x64xf32>
    %25 = arith.addf %22, %24 : vector<256x64xf32>
    %cst_19 = arith.constant 0.000000e+00 : f32
    %26 = vector.broadcast %cst_19 : f32 to vector<256x64xf32>
    %27 = arith.cmpf ogt, %25, %26 : vector<256x64xf32>
    %cst_20 = arith.constant 0.00999999977 : f32
    %28 = vector.broadcast %cst_20 : f32 to vector<256x64xf32>
    %29 = arith.mulf %28, %25 : vector<256x64xf32>
    %30 = arith.select %27, %25, %29 : vector<256x64xi1>, vector<256x64xf32>
    %c0_21 = arith.constant 0 : index
    %c0_22 = arith.constant 0 : index
    %31 = vector.load %arg8[%c0_21, %c0_22] : memref<64x128xf32, #tpu.memory_space<vmem>>, vector<64x128xf32>
    %cst_23 = arith.constant dense<0.000000e+00> : vector<256x128xf32>
    %32 = tpu.matmul %30, %31, %cst_23 {dimension_numbers = #tpu.dot_dimension_numbers<[1], [0], [0], [1], [0, 0, 1, 1], [], []>} : vector<256x64xf32>, vector<64x128xf32>, vector<256x128xf32> -> vector<256x128xf32>
    %c0_24 = arith.constant 0 : index
    %c0_25 = arith.constant 0 : index
    %33 = vector.load %arg9[%c0_24, %c0_25] : memref<1x128xf32, #tpu.memory_space<vmem>>, vector<1x128xf32>
    %34 = vector.broadcast %33 : vector<1x128xf32> to vector<256x128xf32>
    %35 = arith.addf %32, %34 : vector<256x128xf32>
    %c0_26 = arith.constant 0 : index
    %c0_27 = arith.constant 0 : index
    %36 = vector.load %arg10[%c0_26, %c0_27] : memref<256x128xf32, #tpu.memory_space<vmem>>, vector<256x128xf32>
    tpu.vector_store %arg10[%c0_26, %c0_27], %35 {strides = array<i32>} : memref<256x128xf32, #tpu.memory_space<vmem>>, vector<256x128xf32>,
    return
  }
  func.func @transform_0(%arg0: i32) -> (i32, i32) {
    %c0_i32 = arith.constant 0 : i32
    %c0_i32_0 = arith.constant 0 : i32
    return %arg0, %c0_i32 : i32, i32
  }
  func.func @transform_1(%arg0: i32) -> (i32, i32) {
    %c0_i32 = arith.constant 0 : i32
    %c0_i32_0 = arith.constant 0 : i32
    %c0_i32_1 = arith.constant 0 : i32
    return %c0_i32, %c0_i32_0 : i32, i32
  }
  func.func @transform_2(%arg0: i32) -> (i32, i32) {
    %c0_i32 = arith.constant 0 : i32
    %c0_i32_0 = arith.constant 0 : i32
    %c0_i32_1 = arith.constant 0 : i32
    return %c0_i32, %c0_i32_0 : i32, i32
  }
  func.func @transform_3(%arg0: i32) -> (i32, i32) {
    %c0_i32 = arith.constant 0 : i32
    %c0_i32_0 = arith.constant 0 : i32
    %c0_i32_1 = arith.constant 0 : i32
    return %c0_i32, %c0_i32_0 : i32, i32
  }
  func.func @transform_4(%arg0: i32) -> (i32, i32) {
    %c0_i32 = arith.constant 0 : i32
    %c0_i32_0 = arith.constant 0 : i32
    %c0_i32_1 = arith.constant 0 : i32
    return %c0_i32, %c0_i32_0 : i32, i32
  }
  func.func @transform_5(%arg0: i32) -> (i32, i32) {
    %c0_i32 = arith.constant 0 : i32
    %c0_i32_0 = arith.constant 0 : i32
    %c0_i32_1 = arith.constant 0 : i32
    return %c0_i32, %c0_i32_0 : i32, i32
  }
  func.func @transform_6(%arg0: i32) -> (i32, i32) {
    %c0_i32 = arith.constant 0 : i32
    %c0_i32_0 = arith.constant 0 : i32
    %c0_i32_1 = arith.constant 0 : i32
    return %c0_i32, %c0_i32_0 : i32, i32
  }
  func.func @transform_7(%arg0: i32) -> (i32, i32) {
    %c0_i32 = arith.constant 0 : i32
    %c0_i32_0 = arith.constant 0 : i32
    %c0_i32_1 = arith.constant 0 : i32
    return %c0_i32, %c0_i32_0 : i32, i32
  }
  func.func @transform_8(%arg0: i32) -> (i32, i32) {
    %c0_i32 = arith.constant 0 : i32
    %c0_i32_0 = arith.constant 0 : i32
    %c0_i32_1 = arith.constant 0 : i32
    return %c0_i32, %c0_i32_0 : i32, i32
  }
  func.func @transform_9(%arg0: i32) -> (i32, i32) {
    %c0_i32 = arith.constant 0 : i32
    %c0_i32_0 = arith.constant 0 : i32
    return %arg0, %c0_i32 : i32, i32
  }
}

</mosaic_0001>

<llo_original>
// kernel: simple_autoencoder_forward.1
$region0: #{simple_autoencoder_forward.1}
  #allocation0 [shape = 'u32[]', space=smem, size = 0x4, offset = 0x4, fixed_abs, tag = 'smem constant byte address 0x4 - core index']
  #allocation1 [shape = 'u32[144,128]{1,0:T(1,128)}', space=vmem, size = 0x12000, scoped, tag = 'internal scratch']
  %s0 = inlined_call_operand.hbm [shape: f32[512,128], index: 0, kind: input, shape index: {}]
  %s1 = inlined_call_operand.vmem [shape: f32[128,64], index: 1, kind: input, shape index: {}]
  %s2 = inlined_call_operand.vmem [shape: f32[1,64], index: 2, kind: input, shape index: {}]
  %s3 = inlined_call_operand.vmem [shape: f32[64,16], index: 3, kind: input, shape index: {}]
  %s4 = inlined_call_operand.vmem [shape: f32[1,16], index: 4, kind: input, shape index: {}]
  %s5 = inlined_call_operand.vmem [shape: f32[16,64], index: 5, kind: input, shape index: {}]
  %s6 = inlined_call_operand.vmem [shape: f32[1,64], index: 6, kind: input, shape index: {}]
  %s7 = inlined_call_operand.vmem [shape: f32[64,128], index: 7, kind: input, shape index: {}]
  %s8 = inlined_call_operand.vmem [shape: f32[1,128], index: 8, kind: input, shape index: {}]
  %s9 = inlined_call_operand.hbm [shape: f32[512,128], index: 9, kind: output, shape index: {}]
  %s10 = sld [smem:[#allocation0]]
  $region73: #{simple_autoencoder_forward.1} parent=0
    _
  %s12 = ssub.s32 1, %s10
  %s13 = scalar_select 0, %s12, %s10
  $region1: #{simple_autoencoder_forward.1} parent=0
    #allocation2 [shape = 'u8[262144]{0}', space=vmem, size = 0x40000, scoped, tag = 'input window, operand 0']
    #allocation3 [shape = 's32[2]{0}', space=sflag, size = 0x8, scoped, tag = 'scoped memory for simple_autoencoder_forward.1']
    #allocation4 [shape = 's32[2]{0}', space=sflag, size = 0x8, scoped, tag = 'scoped memory for simple_autoencoder_forward.1']
    #allocation5 [shape = 'u8[262144]{0}', space=vmem, size = 0x40000, scoped, tag = 'output window, operand 0']
    %14 = vsyncpa [#allocation3], 0
    %s15 = scalar_lea.sflag [#allocation3], 1
    %16 = vsyncpa %s15, 0
    %17 = vsyncpa [#allocation4], 0
    %s18 = scalar_lea.sflag [#allocation4], 1
    %19 = vsyncpa %s18, 0
    loop: start=0, step=1, limit=4
    $region2: #{simple_autoencoder_forward.1} parent=1 // loop_pre_header
      _
    $region3: #{simple_autoencoder_forward.1} parent=1 // loop_header
      %s21 = sphi 0, %s25
      %p22 = scmp.ge.s32.totalorder %s21, 4
      %s31 = sphi 0, %s33
      %s34 = sphi 0, %s31
      %s35 = sphi 0, %s34
      %s51 = sphi 0, %s35
      %s55 = sphi 0, %s55
      %s57 = sphi 0, %s55
      %s58 = sphi 0, %s57
      %s72 = sphi 0, %s58
      %s76 = sphi 0, %s76
      %s78 = sphi 0, %s76
      %s79 = sphi 0, %s78
      %s93 = sphi 0, %s79
      %s97 = sphi 0, %s97
      %s99 = sphi 0, %s97
      %s100 = sphi 0, %s99
      %s114 = sphi 0, %s100
      %s118 = sphi 0, %s118
      %s120 = sphi 0, %s118
      %s121 = sphi 0, %s120
      %s135 = sphi 0, %s121
      %s139 = sphi 0, %s139
      %s141 = sphi 0, %s139
      %s142 = sphi 0, %s141
      %s156 = sphi 0, %s142
      %s160 = sphi 0, %s160
      %s162 = sphi 0, %s160
      %s163 = sphi 0, %s162
      %s177 = sphi 0, %s163
      %s181 = sphi 0, %s181
      %s183 = sphi 0, %s181
      %s184 = sphi 0, %s183
      %s198 = sphi 0, %s184
      %s202 = sphi 0, %s202
      %s204 = sphi 0, %s202
      %s205 = sphi 0, %s204
      %s219 = sphi 0, %s205
      %s225 = sphi 0, %s227
      %s228 = sphi 0, %s225
      %s229 = sphi 0, %s228
      %s245 = sphi 0, %s229
    $region4: #{simple_autoencoder_forward.1} parent=1 // loop_header_branch
      %24 = sbr.rel (%p22) target = $region8
    $region5: #{simple_autoencoder_forward.1} parent=1 // loop_body
      %s26 = ssub.s32 %s21, 1
      %s27 = ssub.s32 %s21, 2
      %s28 = sadd.s32 %s21, 1
      %s29 = ssub.s32 %s21, %s28
      %p30 = scmp.eq.s32.totalorder %s29, 0
      %s32 = sadd.s32 %s31, 1
      %s33 = scalar_select %p30, %s31, %s32
      %p36 = pneg %p30
      %p37 = scmp.eq.s32.totalorder %s21, 1
      %p38 = por %p36, %p37
      %p39 = scmp.ne.s32.totalorder %s31, %s34
      %p40 = scmp.eq.s32.totalorder %s21, 0
      %p41 = por %p39, %p40
      %p42 = scmp.ne.s32.totalorder %s31, %s34
      %p43 = scmp.eq.s32.totalorder %s26, 1
      %p44 = por %p42, %p43
      %p45 = scmp.ne.s32.totalorder %s34, %s35
      %p46 = scmp.eq.s32.totalorder %s26, 0
      %p47 = por %p45, %p46
      %p48 = scmp.ne.s32.totalorder %s34, %s35
      %p49 = scmp.eq.s32.totalorder %s27, 1
      %p50 = por %p48, %p49
      %p52 = scmp.ne.s32.totalorder %s35, %s51
      %p53 = scmp.eq.s32.totalorder %s27, 0
      %p54 = por %p52, %p53
      %s56 = sadd.s32 %s55, 1
      %p59 = scmp.eq.s32.totalorder %s21, 1
      %p60 = scmp.ne.s32.totalorder %s55, %s57
      %p61 = scmp.eq.s32.totalorder %s21, 0
      %p62 = por %p60, %p61
      %p63 = scmp.ne.s32.totalorder %s55, %s57
      %p64 = scmp.eq.s32.totalorder %s26, 1
      %p65 = por %p63, %p64
      %p66 = scmp.ne.s32.totalorder %s57, %s58
      %p67 = scmp.eq.s32.totalorder %s26, 0
      %p68 = por %p66, %p67
      %p69 = scmp.ne.s32.totalorder %s57, %s58
      %p70 = scmp.eq.s32.totalorder %s27, 1
      %p71 = por %p69, %p70
      %p73 = scmp.ne.s32.totalorder %s58, %s72
      %p74 = scmp.eq.s32.totalorder %s27, 0
      %p75 = por %p73, %p74
      %s77 = sadd.s32 %s76, 1
      %p80 = scmp.eq.s32.totalorder %s21, 1
      %p81 = scmp.ne.s32.totalorder %s76, %s78
      %p82 = scmp.eq.s32.totalorder %s21, 0
      %p83 = por %p81, %p82
      %p84 = scmp.ne.s32.totalorder %s76, %s78
      %p85 = scmp.eq.s32.totalorder %s26, 1
      %p86 = por %p84, %p85
      %p87 = scmp.ne.s32.totalorder %s78, %s79
      %p88 = scmp.eq.s32.totalorder %s26, 0
      %p89 = por %p87, %p88
      %p90 = scmp.ne.s32.totalorder %s78, %s79
      %p91 = scmp.eq.s32.totalorder %s27, 1
      %p92 = por %p90, %p91
      %p94 = scmp.ne.s32.totalorder %s79, %s93
      %p95 = scmp.eq.s32.totalorder %s27, 0
      %p96 = por %p94, %p95
      %s98 = sadd.s32 %s97, 1
      %p101 = scmp.eq.s32.totalorder %s21, 1
      %p102 = scmp.ne.s32.totalorder %s97, %s99
      %p103 = scmp.eq.s32.totalorder %s21, 0
      %p104 = por %p102, %p103
      %p105 = scmp.ne.s32.totalorder %s97, %s99
      %p106 = scmp.eq.s32.totalorder %s26, 1
      %p107 = por %p105, %p106
      %p108 = scmp.ne.s32.totalorder %s99, %s100
      %p109 = scmp.eq.s32.totalorder %s26, 0
      %p110 = por %p108, %p109
      %p111 = scmp.ne.s32.totalorder %s99, %s100
      %p112 = scmp.eq.s32.totalorder %s27, 1
      %p113 = por %p111, %p112
      %p115 = scmp.ne.s32.totalorder %s100, %s114
      %p116 = scmp.eq.s32.totalorder %s27, 0
      %p117 = por %p115, %p116
      %s119 = sadd.s32 %s118, 1
      %p122 = scmp.eq.s32.totalorder %s21, 1
      %p123 = scmp.ne.s32.totalorder %s118, %s120
      %p124 = scmp.eq.s32.totalorder %s21, 0
      %p125 = por %p123, %p124
      %p126 = scmp.ne.s32.totalorder %s118, %s120
      %p127 = scmp.eq.s32.totalorder %s26, 1
      %p128 = por %p126, %p127
      %p129 = scmp.ne.s32.totalorder %s120, %s121
      %p130 = scmp.eq.s32.totalorder %s26, 0
      %p131 = por %p129, %p130
      %p132 = scmp.ne.s32.totalorder %s120, %s121
      %p133 = scmp.eq.s32.totalorder %s27, 1
      %p134 = por %p132, %p133
      %p136 = scmp.ne.s32.totalorder %s121, %s135
      %p137 = scmp.eq.s32.totalorder %s27, 0
      %p138 = por %p136, %p137
      %s140 = sadd.s32 %s139, 1
      %p143 = scmp.eq.s32.totalorder %s21, 1
      %p144 = scmp.ne.s32.totalorder %s139, %s141
      %p145 = scmp.eq.s32.totalorder %s21, 0
      %p146 = por %p144, %p145
      %p147 = scmp.ne.s32.totalorder %s139, %s141
      %p148 = scmp.eq.s32.totalorder %s26, 1
      %p149 = por %p147, %p148
      %p150 = scmp.ne.s32.totalorder %s141, %s142
      %p151 = scmp.eq.s32.totalorder %s26, 0
      %p152 = por %p150, %p151
      %p153 = scmp.ne.s32.totalorder %s141, %s142
      %p154 = scmp.eq.s32.totalorder %s27, 1
      %p155 = por %p153, %p154
      %p157 = scmp.ne.s32.totalorder %s142, %s156
      %p158 = scmp.eq.s32.totalorder %s27, 0
      %p159 = por %p157, %p158
      %s161 = sadd.s32 %s160, 1
      %p164 = scmp.eq.s32.totalorder %s21, 1
      %p165 = scmp.ne.s32.totalorder %s160, %s162
      %p166 = scmp.eq.s32.totalorder %s21, 0
      %p167 = por %p165, %p166
      %p168 = scmp.ne.s32.totalorder %s160, %s162
      %p169 = scmp.eq.s32.totalorder %s26, 1
      %p170 = por %p168, %p169
      %p171 = scmp.ne.s32.totalorder %s162, %s163
      %p172 = scmp.eq.s32.totalorder %s26, 0
      %p173 = por %p171, %p172
      %p174 = scmp.ne.s32.totalorder %s162, %s163
      %p175 = scmp.eq.s32.totalorder %s27, 1
      %p176 = por %p174, %p175
      %p178 = scmp.ne.s32.totalorder %s163, %s177
      %p179 = scmp.eq.s32.totalorder %s27, 0
      %p180 = por %p178, %p179
      %s182 = sadd.s32 %s181, 1
      %p185 = scmp.eq.s32.totalorder %s21, 1
      %p186 = scmp.ne.s32.totalorder %s181, %s183
      %p187 = scmp.eq.s32.totalorder %s21, 0
      %p188 = por %p186, %p187
      %p189 = scmp.ne.s32.totalorder %s181, %s183
      %p190 = scmp.eq.s32.totalorder %s26, 1
      %p191 = por %p189, %p190
      %p192 = scmp.ne.s32.totalorder %s183, %s184
      %p193 = scmp.eq.s32.totalorder %s26, 0
      %p194 = por %p192, %p193
      %p195 = scmp.ne.s32.totalorder %s183, %s184
      %p196 = scmp.eq.s32.totalorder %s27, 1
      %p197 = por %p195, %p196
      %p199 = scmp.ne.s32.totalorder %s184, %s198
      %p200 = scmp.eq.s32.totalorder %s27, 0
      %p201 = por %p199, %p200
      %s203 = sadd.s32 %s202, 1
      %p206 = scmp.eq.s32.totalorder %s21, 1
      %p207 = scmp.ne.s32.totalorder %s202, %s204
      %p208 = scmp.eq.s32.totalorder %s21, 0
      %p209 = por %p207, %p208
      %p210 = scmp.ne.s32.totalorder %s202, %s204
      %p211 = scmp.eq.s32.totalorder %s26, 1
      %p212 = por %p210, %p211
      %p213 = scmp.ne.s32.totalorder %s204, %s205
      %p214 = scmp.eq.s32.totalorder %s26, 0
      %p215 = por %p213, %p214
      %p216 = scmp.ne.s32.totalorder %s204, %s205
      %p217 = scmp.eq.s32.totalorder %s27, 1
      %p218 = por %p216, %p217
      %p220 = scmp.ne.s32.totalorder %s205, %s219
      %p221 = scmp.eq.s32.totalorder %s27, 0
      %p222 = por %p220, %p221
      %s223 = ssub.s32 %s21, %s28
      %p224 = scmp.eq.s32.totalorder %s223, 0
      %s226 = sadd.s32 %s225, 1
      %s227 = scalar_select %p224, %s225, %s226
      %p230 = pneg %p224
      %p231 = scmp.eq.s32.totalorder %s21, 1
      %p232 = por %p230, %p231
      %p233 = scmp.ne.s32.totalorder %s225, %s228
      %p234 = scmp.eq.s32.totalorder %s21, 0
      %p235 = por %p233, %p234
      %p236 = scmp.ne.s32.totalorder %s225, %s228
      %p237 = scmp.eq.s32.totalorder %s26, 1
      %p238 = por %p236, %p237
      %p239 = scmp.ne.s32.totalorder %s228, %s229
      %p240 = scmp.eq.s32.totalorder %s26, 0
      %p241 = por %p239, %p240
      %p242 = scmp.ne.s32.totalorder %s228, %s229
      %p243 = scmp.eq.s32.totalorder %s27, 1
      %p244 = por %p242, %p243
      %p246 = scmp.ne.s32.totalorder %s229, %s245
      %p247 = scmp.eq.s32.totalorder %s27, 0
      %p248 = por %p246, %p247
      %p249 = scmp.le.s32.totalorder 1, %s21
      %p250 = scmp.lt.s32.totalorder %s21, 3
      %p251 = pnand %p249, %p250
      %p252 = pneg %p251
      // Predicated region
      $region9: #{simple_autoencoder_forward.1} parent=5 // pred_check
        _
      $region10: #{simple_autoencoder_forward.1} parent=5 // pred_check_branch
        %254 = sbr.rel (%p251) target = $region12
      $region11: #{simple_autoencoder_forward.1} parent=5 // pred_region
        %s255 = ssub.s32 %s21, 1
        // Predicated region
        $region13: #{simple_autoencoder_forward.1} parent=11 // pred_check
          %p256 = pneg %p68
        $region14: #{simple_autoencoder_forward.1} parent=11 // pred_check_branch
          %258 = sbr.rel (%p256) target = $region16
        $region15: #{simple_autoencoder_forward.1} parent=11 // pred_region
          _
        $region16: #{simple_autoencoder_forward.1} parent=11 // pred_fallthru
          _
        // Predicated region
        $region17: #{simple_autoencoder_forward.1} parent=11 // pred_check
          %p259 = pneg %p89
        $region18: #{simple_autoencoder_forward.1} parent=11 // pred_check_branch
          %261 = sbr.rel (%p259) target = $region20
        $region19: #{simple_autoencoder_forward.1} parent=11 // pred_region
          _
        $region20: #{simple_autoencoder_forward.1} parent=11 // pred_fallthru
          _
        // Predicated region
        $region21: #{simple_autoencoder_forward.1} parent=11 // pred_check
          %p262 = pneg %p110
        $region22: #{simple_autoencoder_forward.1} parent=11 // pred_check_branch
          %264 = sbr.rel (%p262) target = $region24
        $region23: #{simple_autoencoder_forward.1} parent=11 // pred_region
          _
        $region24: #{simple_autoencoder_forward.1} parent=11 // pred_fallthru
          _
        // Predicated region
        $region25: #{simple_autoencoder_forward.1} parent=11 // pred_check
          %p265 = pneg %p131
        $region26: #{simple_autoencoder_forward.1} parent=11 // pred_check_branch
          %267 = sbr.rel (%p265) target = $region28
        $region27: #{simple_autoencoder_forward.1} parent=11 // pred_region
          _
        $region28: #{simple_autoencoder_forward.1} parent=11 // pred_fallthru
          _
        // Predicated region
        $region29: #{simple_autoencoder_forward.1} parent=11 // pred_check
          %p268 = pneg %p152
        $region30: #{simple_autoencoder_forward.1} parent=11 // pred_check_branch
          %270 = sbr.rel (%p268) target = $region32
        $region31: #{simple_autoencoder_forward.1} parent=11 // pred_region
          _
        $region32: #{simple_autoencoder_forward.1} parent=11 // pred_fallthru
          _
        // Predicated region
        $region33: #{simple_autoencoder_forward.1} parent=11 // pred_check
          %p271 = pneg %p173
        $region34: #{simple_autoencoder_forward.1} parent=11 // pred_check_branch
          %273 = sbr.rel (%p271) target = $region36
        $region35: #{simple_autoencoder_forward.1} parent=11 // pred_region
          _
        $region36: #{simple_autoencoder_forward.1} parent=11 // pred_fallthru
          _
        // Predicated region
        $region37: #{simple_autoencoder_forward.1} parent=11 // pred_check
          %p274 = pneg %p194
        $region38: #{simple_autoencoder_forward.1} parent=11 // pred_check_branch
          %276 = sbr.rel (%p274) target = $region40
        $region39: #{simple_autoencoder_forward.1} parent=11 // pred_region
          _
        $region40: #{simple_autoencoder_forward.1} parent=11 // pred_fallthru
          _
        // Predicated region
        $region41: #{simple_autoencoder_forward.1} parent=11 // pred_check
          %p277 = pneg %p215
        $region42: #{simple_autoencoder_forward.1} parent=11 // pred_check_branch
          %279 = sbr.rel (%p277) target = $region44
        $region43: #{simple_autoencoder_forward.1} parent=11 // pred_region
          _
        $region44: #{simple_autoencoder_forward.1} parent=11 // pred_fallthru
          _
      $region12: #{simple_autoencoder_forward.1} parent=5 // pred_fallthru
        _
      %p280 = scmp.lt.s32.totalorder %s21, 2
      // Predicated region
      $region45: #{simple_autoencoder_forward.1} parent=5 // pred_check
        %p281 = pneg %p280
      $region46: #{simple_autoencoder_forward.1} parent=5 // pred_check_branch
        %283 = sbr.rel (%p281) target = $region48
      $region47: #{simple_autoencoder_forward.1} parent=5 // pred_region
        // Predicated region
        $region49: #{simple_autoencoder_forward.1} parent=47 // pred_check
          %p284 = pneg %p41
        $region50: #{simple_autoencoder_forward.1} parent=47 // pred_check_branch
          %286 = sbr.rel (%p284) target = $region52
        $region51: #{simple_autoencoder_forward.1} parent=47 // pred_region
          %s287 = sand.u32 %s31, 1
          %s288 = scalar_lea.sflag [#allocation3], %s287
          %s289 = sand.u32 %s31, 1
          %s290 = smul.addr %s289, 256
          %s291 = scalar_lea.vmem [#allocation2], %s290
          %s292 = smul.u32 32, %s21
          %s294 = ssub.s32 4096, 4096
          %295 = vsyncadd %s288, %s294
          %s296 = smul.addr %s292, 128
          %s297 = scalar_lea.hbm %s0, %s296
          %s298 = sshll.u32 %s291, 4
          %s299 = int_to_ptr.vmem [resolvable:$true] %s298
          %304 = dma.hbm_to_vmem [thread:$0]  %s297, 4096, %s299, %s288, 128, 128, 8
        $region52: #{simple_autoencoder_forward.1} parent=47 // pred_fallthru
          _
      $region48: #{simple_autoencoder_forward.1} parent=5 // pred_fallthru
        _
      %p305 = scmp.le.s32.totalorder 1, %s21
      %p306 = scmp.lt.s32.totalorder %s21, 3
      %p307 = pnand %p305, %p306
      %p308 = pneg %p307
      // Predicated region
      $region53: #{simple_autoencoder_forward.1} parent=5 // pred_check
        _
      $region54: #{simple_autoencoder_forward.1} parent=5 // pred_check_branch
        %310 = sbr.rel (%p307) target = $region56
      $region55: #{simple_autoencoder_forward.1} parent=5 // pred_region
        %s311 = ssub.s32 %s21, 1
        %s312 = sand.u32 %s34, 1
        %s313 = scalar_lea.sflag [#allocation3], %s312
        %s314 = sand.u32 %s34, 1
        %s315 = smul.addr %s314, 256
        %s316 = scalar_lea.vmem [#allocation2], %s315
        // Predicated region
        $region57: #{simple_autoencoder_forward.1} parent=55 // pred_check
          %p317 = pneg %p47
        $region58: #{simple_autoencoder_forward.1} parent=55 // pred_check_branch
          %319 = sbr.rel (%p317) target = $region60
        $region59: #{simple_autoencoder_forward.1} parent=55 // pred_region
          %320 = dma.done %s313, 4096
        $region60: #{simple_autoencoder_forward.1} parent=55 // pred_fallthru
          _
        %s321 = sand.u32 %s34, 1
        %s322 = scalar_lea.sflag [#allocation3], %s321
        %s323 = sand.u32 %s34, 1
        %s324 = smul.addr %s323, 256
        %s325 = scalar_lea.vmem [#allocation2], %s324
        %p326 = pneg %p47
        %p327 = pneg %p44
        %p328 = pneg %p68
        %p329 = pneg %p65
        %p330 = pneg %p89
        %p331 = pneg %p86
        %p332 = pneg %p110
        %p333 = pneg %p107
        %p334 = pneg %p131
        %p335 = pneg %p128
        %p336 = pneg %p152
        %p337 = pneg %p149
        %p338 = pneg %p173
        %p339 = pneg %p170
        %p340 = pneg %p194
        %p341 = pneg %p191
        %p342 = pneg %p215
        %p343 = pneg %p212
        %p344 = pneg %p241
        %p345 = pneg %p238
        %s346 = sand.u32 %s228, 1
        %s347 = scalar_lea.sflag [#allocation4], %s346
        %s348 = sand.u32 %s228, 1
        %s349 = smul.addr %s348, 256
        %s350 = scalar_lea.vmem [#allocation5], %s349
        %s351 = smul.u32 32, %s26
        %s352 = smul.u32 32, %s26
        %v353 = vld [vmem:[%s316] sm:$0xff]
        %v354 = vld [vmem:[%s316 + $0x8] sm:$0xff]
        %v355 = vld [vmem:[%s316 + $0x10] sm:$0xff]
        %v356 = vld [vmem:[%s316 + $0x18] sm:$0xff]
        %v357 = vld [vmem:[%s316 + $0x20] sm:$0xff]
        %v358 = vld [vmem:[%s316 + $0x28] sm:$0xff]
        %v359 = vld [vmem:[%s316 + $0x30] sm:$0xff]
        %v360 = vld [vmem:[%s316 + $0x38] sm:$0xff]
        %v361 = vld [vmem:[%s316 + $0x40] sm:$0xff]
        %v362 = vld [vmem:[%s316 + $0x48] sm:$0xff]
        %v363 = vld [vmem:[%s316 + $0x50] sm:$0xff]
        %v364 = vld [vmem:[%s316 + $0x58] sm:$0xff]
        %v365 = vld [vmem:[%s316 + $0x60] sm:$0xff]
        %v366 = vld [vmem:[%s316 + $0x68] sm:$0xff]
        %v367 = vld [vmem:[%s316 + $0x70] sm:$0xff]
        %v368 = vld [vmem:[%s316 + $0x78] sm:$0xff]
        %v369 = vld [vmem:[%s316 + $0x80] sm:$0xff]
        %v370 = vld [vmem:[%s316 + $0x88] sm:$0xff]
        %v371 = vld [vmem:[%s316 + $0x90] sm:$0xff]
        %v372 = vld [vmem:[%s316 + $0x98] sm:$0xff]
        %v373 = vld [vmem:[%s316 + $0xa0] sm:$0xff]
        %v374 = vld [vmem:[%s316 + $0xa8] sm:$0xff]
        %v375 = vld [vmem:[%s316 + $0xb0] sm:$0xff]
        %v376 = vld [vmem:[%s316 + $0xb8] sm:$0xff]
        %v377 = vld [vmem:[%s316 + $0xc0] sm:$0xff]
        %v378 = vld [vmem:[%s316 + $0xc8] sm:$0xff]
        %v379 = vld [vmem:[%s316 + $0xd0] sm:$0xff]
        %v380 = vld [vmem:[%s316 + $0xd8] sm:$0xff]
        %v381 = vld [vmem:[%s316 + $0xe0] sm:$0xff]
        %v382 = vld [vmem:[%s316 + $0xe8] sm:$0xff]
        %v383 = vld [vmem:[%s316 + $0xf0] sm:$0xff]
        %v384 = vld [vmem:[%s316 + $0xf8] sm:$0xff]
        %v385 = vld [vmem:[%s1] sm:$0xff]
        %v386 = vld [vmem:[%s1 + $0x8] sm:$0xff]
        %v387 = vld [vmem:[%s1 + $0x10] sm:$0xff]
        %v388 = vld [vmem:[%s1 + $0x18] sm:$0xff]
        %v389 = vld [vmem:[%s1 + $0x20] sm:$0xff]
        %v390 = vld [vmem:[%s1 + $0x28] sm:$0xff]
        %v391 = vld [vmem:[%s1 + $0x30] sm:$0xff]
        %v392 = vld [vmem:[%s1 + $0x38] sm:$0xff]
        %v393 = vld [vmem:[%s1 + $0x40] sm:$0xff]
        %v394 = vld [vmem:[%s1 + $0x48] sm:$0xff]
        %v395 = vld [vmem:[%s1 + $0x50] sm:$0xff]
        %v396 = vld [vmem:[%s1 + $0x58] sm:$0xff]
        %v397 = vld [vmem:[%s1 + $0x60] sm:$0xff]
        %v398 = vld [vmem:[%s1 + $0x68] sm:$0xff]
        %v399 = vld [vmem:[%s1 + $0x70] sm:$0xff]
        %v400 = vld [vmem:[%s1 + $0x78] sm:$0xff]
        %v401 = vld [vmem:[%s2] sm:$0x1]
        %v403 = vlaneseq
        %v404 = vshrl.u32 %v403, 7
        %v405 = vsub.s32 0, %v404
        %v406 = vrot.slane %v401, %v405
        %408 = vmatprep.subr.mxu0 0.0
        %409 = vmatpush1.msra.mxu0 %v385
        %410 = vmatprep.subr.mxu0 0.0
        %411 = vmatpush1.msra.mxu0 %v386
        %412 = vmatprep.subr.mxu0 0.0
        %413 = vmatpush1.msra.mxu0 %v387
        %414 = vmatprep.subr.mxu0 0.0
        %415 = vmatpush1.msra.mxu0 %v388
        %416 = vmatprep.subr.mxu0 0.0
        %417 = vmatpush1.msra.mxu0 %v389
        %418 = vmatprep.subr.mxu0 0.0
        %419 = vmatpush1.msra.mxu0 %v390
        %420 = vmatprep.subr.mxu0 0.0
        %421 = vmatpush1.msra.mxu0 %v391
        %422 = vmatprep.subr.mxu0 0.0
        %423 = vmatpush1.msra.mxu0 %v392
        %424 = vmatprep.subr.mxu0 0.0
        %425 = vmatpush1.msra.mxu0 %v393
        %426 = vmatprep.subr.mxu0 0.0
        %427 = vmatpush1.msra.mxu0 %v394
        %428 = vmatprep.subr.mxu0 0.0
        %429 = vmatpush1.msra.mxu0 %v395
        %430 = vmatprep.subr.mxu0 0.0
        %431 = vmatpush1.msra.mxu0 %v396
        %432 = vmatprep.subr.mxu0 0.0
        %433 = vmatpush1.msra.mxu0 %v397
        %434 = vmatprep.subr.mxu0 0.0
        %435 = vmatpush1.msra.mxu0 %v398
        %436 = vmatprep.subr.mxu0 0.0
        %437 = vmatpush1.msra.mxu0 %v399
        %438 = vmatprep.subr.mxu0 0.0
        %439 = vmatpush1.msra.mxu0 %v400
        %440 = vmatprep.subr.mxu0 0.0
        %441 = vmatpush1.msra.mxu0 0.0
        %442 = vmatprep.subr.mxu0 0.0
        %443 = vmatpush1.msra.mxu0 0.0
        %444 = vmatprep.subr.mxu0 0.0
        %445 = vmatpush1.msra.mxu0 0.0
        %446 = vmatprep.subr.mxu0 0.0
        %447 = vmatpush1.msra.mxu0 0.0
        %448 = vmatprep.subr.mxu0 0.0
        %449 = vmatpush1.msra.mxu0 0.0
        %450 = vmatprep.subr.mxu0 0.0
        %451 = vmatpush1.msra.mxu0 0.0
        %452 = vmatprep.subr.mxu0 0.0
        %453 = vmatpush1.msra.mxu0 0.0
        %454 = vmatprep.subr.mxu0 0.0
        %455 = vmatpush1.msra.mxu0 0.0
        %456 = vmatprep.subr.mxu0 0.0
        %457 = vmatpush1.msra.mxu0 0.0
        %458 = vmatprep.subr.mxu0 0.0
        %459 = vmatpush1.msra.mxu0 0.0
        %460 = vmatprep.subr.mxu0 0.0
        %461 = vmatpush1.msra.mxu0 0.0
        %462 = vmatprep.subr.mxu0 0.0
        %463 = vmatpush1.msra.mxu0 0.0
        %464 = vmatprep.subr.mxu0 0.0
        %465 = vmatpush1.msra.mxu0 0.0
        %466 = vmatprep.subr.mxu0 0.0
        %467 = vmatpush1.msra.mxu0 0.0
        %468 = vmatprep.subr.mxu0 0.0
        %469 = vmatpush1.msra.mxu0 0.0
        %470 = vmatprep.subr.mxu0 0.0
        %471 = vmatpush1.msra.mxu0 0.0
        %472 = vmatprep.mubr.f32.mxu0 0.0
        %473 = vmatmul.mubr.f32.gmra.mrb[0].mxu0 %v353
        %v474 = vpop.f32.mrb[0].mxu0
        %v475 = vadd.f32 %v406, %v474
        %v476 = vpop.f32.mrb[0].mxu0
        %477 = vmatprep.mubr.f32.mxu0 0.0
        %478 = vmatmul.mubr.f32.gmra.mrb[0].mxu0 %v354
        %v479 = vpop.f32.mrb[0].mxu0
        %v480 = vadd.f32 %v406, %v479
        %v481 = vpop.f32.mrb[0].mxu0
        %482 = vmatprep.mubr.f32.mxu0 0.0
        %483 = vmatmul.mubr.f32.gmra.mrb[0].mxu0 %v355
        %v484 = vpop.f32.mrb[0].mxu0
        %v485 = vadd.f32 %v406, %v484
        %v486 = vpop.f32.mrb[0].mxu0
        %487 = vmatprep.mubr.f32.mxu0 0.0
        %488 = vmatmul.mubr.f32.gmra.mrb[0].mxu0 %v356
        %v489 = vpop.f32.mrb[0].mxu0
        %v490 = vadd.f32 %v406, %v489
        %v491 = vpop.f32.mrb[0].mxu0
        %492 = vmatprep.mubr.f32.mxu0 0.0
        %493 = vmatmul.mubr.f32.gmra.mrb[0].mxu0 %v357
        %v494 = vpop.f32.mrb[0].mxu0
        %v495 = vadd.f32 %v406, %v494
        %v496 = vpop.f32.mrb[0].mxu0
        %497 = vmatprep.mubr.f32.mxu0 0.0
        %498 = vmatmul.mubr.f32.gmra.mrb[0].mxu0 %v358
        %v499 = vpop.f32.mrb[0].mxu0
        %v500 = vadd.f32 %v406, %v499
        %v501 = vpop.f32.mrb[0].mxu0
        %502 = vmatprep.mubr.f32.mxu0 0.0
        %503 = vmatmul.mubr.f32.gmra.mrb[0].mxu0 %v359
        %v504 = vpop.f32.mrb[0].mxu0
        %v505 = vadd.f32 %v406, %v504
        %v506 = vpop.f32.mrb[0].mxu0
        %507 = vmatprep.mubr.f32.mxu0 0.0
        %508 = vmatmul.mubr.f32.gmra.mrb[0].mxu0 %v360
        %v509 = vpop.f32.mrb[0].mxu0
        %v510 = vadd.f32 %v406, %v509
        %v511 = vpop.f32.mrb[0].mxu0
        %512 = vmatprep.mubr.f32.mxu0 0.0
        %513 = vmatmul.mubr.f32.gmra.mrb[0].mxu0 %v361
        %v514 = vpop.f32.mrb[0].mxu0
        %v515 = vadd.f32 %v406, %v514
        %v516 = vpop.f32.mrb[0].mxu0
        %517 = vmatprep.mubr.f32.mxu0 0.0
        %518 = vmatmul.mubr.f32.gmra.mrb[0].mxu0 %v362
        %v519 = vpop.f32.mrb[0].mxu0
        %v520 = vadd.f32 %v406, %v519
        %v521 = vpop.f32.mrb[0].mxu0
        %522 = vmatprep.mubr.f32.mxu0 0.0
        %523 = vmatmul.mubr.f32.gmra.mrb[0].mxu0 %v363
        %v524 = vpop.f32.mrb[0].mxu0
        %v525 = vadd.f32 %v406, %v524
        %v526 = vpop.f32.mrb[0].mxu0
        %527 = vmatprep.mubr.f32.mxu0 0.0
        %528 = vmatmul.mubr.f32.gmra.mrb[0].mxu0 %v364
        %v529 = vpop.f32.mrb[0].mxu0
        %v530 = vadd.f32 %v406, %v529
        %v531 = vpop.f32.mrb[0].mxu0
        %532 = vmatprep.mubr.f32.mxu0 0.0
        %533 = vmatmul.mubr.f32.gmra.mrb[0].mxu0 %v365
        %v534 = vpop.f32.mrb[0].mxu0
        %v535 = vadd.f32 %v406, %v534
        %v536 = vpop.f32.mrb[0].mxu0
        %537 = vmatprep.mubr.f32.mxu0 0.0
        %538 = vmatmul.mubr.f32.gmra.mrb[0].mxu0 %v366
        %v539 = vpop.f32.mrb[0].mxu0
        %v540 = vadd.f32 %v406, %v539
        %v541 = vpop.f32.mrb[0].mxu0
        %542 = vmatprep.mubr.f32.mxu0 0.0
        %543 = vmatmul.mubr.f32.gmra.mrb[0].mxu0 %v367
        %v544 = vpop.f32.mrb[0].mxu0
        %v545 = vadd.f32 %v406, %v544
        %v546 = vpop.f32.mrb[0].mxu0
        %547 = vmatprep.mubr.f32.mxu0 0.0
        %548 = vmatmul.mubr.f32.gmra.mrb[0].mxu0 %v368
        %v549 = vpop.f32.mrb[0].mxu0
        %v550 = vadd.f32 %v406, %v549
        %v551 = vpop.f32.mrb[0].mxu0
        %552 = vmatprep.mubr.f32.mxu0 0.0
        %553 = vmatmul.mubr.f32.gmra.mrb[0].mxu0 %v369
        %v554 = vpop.f32.mrb[0].mxu0
        %v555 = vadd.f32 %v406, %v554
        %v556 = vpop.f32.mrb[0].mxu0
        %557 = vmatprep.mubr.f32.mxu0 0.0
        %558 = vmatmul.mubr.f32.gmra.mrb[0].mxu0 %v370
        %v559 = vpop.f32.mrb[0].mxu0
        %v560 = vadd.f32 %v406, %v559
        %v561 = vpop.f32.mrb[0].mxu0
        %562 = vmatprep.mubr.f32.mxu0 0.0
        %563 = vmatmul.mubr.f32.gmra.mrb[0].mxu0 %v371
        %v564 = vpop.f32.mrb[0].mxu0
        %v565 = vadd.f32 %v406, %v564
        %v566 = vpop.f32.mrb[0].mxu0
        %567 = vmatprep.mubr.f32.mxu0 0.0
        %568 = vmatmul.mubr.f32.gmra.mrb[0].mxu0 %v372
        %v569 = vpop.f32.mrb[0].mxu0
        %v570 = vadd.f32 %v406, %v569
        %v571 = vpop.f32.mrb[0].mxu0
        %572 = vmatprep.mubr.f32.mxu0 0.0
        %573 = vmatmul.mubr.f32.gmra.mrb[0].mxu0 %v373
        %v574 = vpop.f32.mrb[0].mxu0
        %v575 = vadd.f32 %v406, %v574
        %v576 = vpop.f32.mrb[0].mxu0
        %577 = vmatprep.mubr.f32.mxu0 0.0
        %578 = vmatmul.mubr.f32.gmra.mrb[0].mxu0 %v374
        %v579 = vpop.f32.mrb[0].mxu0
        %v580 = vadd.f32 %v406, %v579
        %v581 = vpop.f32.mrb[0].mxu0
        %582 = vmatprep.mubr.f32.mxu0 0.0
        %583 = vmatmul.mubr.f32.gmra.mrb[0].mxu0 %v375
        %v584 = vpop.f32.mrb[0].mxu0
        %v585 = vadd.f32 %v406, %v584
        %v586 = vpop.f32.mrb[0].mxu0
        %587 = vmatprep.mubr.f32.mxu0 0.0
        %588 = vmatmul.mubr.f32.gmra.mrb[0].mxu0 %v376
        %v589 = vpop.f32.mrb[0].mxu0
        %v590 = vadd.f32 %v406, %v589
        %v591 = vpop.f32.mrb[0].mxu0
        %592 = vmatprep.mubr.f32.mxu0 0.0
        %593 = vmatmul.mubr.f32.gmra.mrb[0].mxu0 %v377
        %v594 = vpop.f32.mrb[0].mxu0
        %v595 = vadd.f32 %v406, %v594
        %v596 = vpop.f32.mrb[0].mxu0
        %597 = vmatprep.mubr.f32.mxu0 0.0
        %598 = vmatmul.mubr.f32.gmra.mrb[0].mxu0 %v378
        %v599 = vpop.f32.mrb[0].mxu0
        %v600 = vadd.f32 %v406, %v599
        %v601 = vpop.f32.mrb[0].mxu0
        %602 = vmatprep.mubr.f32.mxu0 0.0
        %603 = vmatmul.mubr.f32.gmra.mrb[0].mxu0 %v379
        %v604 = vpop.f32.mrb[0].mxu0
        %v605 = vadd.f32 %v406, %v604
        %v606 = vpop.f32.mrb[0].mxu0
        %607 = vmatprep.mubr.f32.mxu0 0.0
        %608 = vmatmul.mubr.f32.gmra.mrb[0].mxu0 %v380
        %v609 = vpop.f32.mrb[0].mxu0
        %v610 = vadd.f32 %v406, %v609
        %v611 = vpop.f32.mrb[0].mxu0
        %612 = vmatprep.mubr.f32.mxu0 0.0
        %613 = vmatmul.mubr.f32.gmra.mrb[0].mxu0 %v381
        %v614 = vpop.f32.mrb[0].mxu0
        %v615 = vadd.f32 %v406, %v614
        %v616 = vpop.f32.mrb[0].mxu0
        %617 = vmatprep.mubr.f32.mxu0 0.0
        %618 = vmatmul.mubr.f32.gmra.mrb[0].mxu0 %v382
        %v619 = vpop.f32.mrb[0].mxu0
        %v620 = vadd.f32 %v406, %v619
        %v621 = vpop.f32.mrb[0].mxu0
        %622 = vmatprep.mubr.f32.mxu0 0.0
        %623 = vmatmul.mubr.f32.gmra.mrb[0].mxu0 %v383
        %v624 = vpop.f32.mrb[0].mxu0
        %v625 = vadd.f32 %v406, %v624
        %v626 = vpop.f32.mrb[0].mxu0
        %627 = vmatprep.mubr.f32.mxu0 0.0
        %628 = vmatmul.mubr.f32.gmra.mrb[0].mxu0 %v384
        %v629 = vpop.f32.mrb[0].mxu0
        %v630 = vadd.f32 %v406, %v629
        %v631 = vpop.f32.mrb[0].mxu0
        %632 = vdwg.mxu0
        %vm633 = vcmp.gt.f32.partialorder %v475, 0.0
        %vm634 = vcmp.gt.f32.partialorder %v480, 0.0
        %vm635 = vcmp.gt.f32.partialorder %v485, 0.0
        %vm636 = vcmp.gt.f32.partialorder %v490, 0.0
        %vm637 = vcmp.gt.f32.partialorder %v495, 0.0
        %vm638 = vcmp.gt.f32.partialorder %v500, 0.0
        %vm639 = vcmp.gt.f32.partialorder %v505, 0.0
        %vm640 = vcmp.gt.f32.partialorder %v510, 0.0
        %vm641 = vcmp.gt.f32.partialorder %v515, 0.0
        %vm642 = vcmp.gt.f32.partialorder %v520, 0.0
        %vm643 = vcmp.gt.f32.partialorder %v525, 0.0
        %vm644 = vcmp.gt.f32.partialorder %v530, 0.0
        %vm645 = vcmp.gt.f32.partialorder %v535, 0.0
        %vm646 = vcmp.gt.f32.partialorder %v540, 0.0
        %vm647 = vcmp.gt.f32.partialorder %v545, 0.0
        %vm648 = vcmp.gt.f32.partialorder %v550, 0.0
        %vm649 = vcmp.gt.f32.partialorder %v555, 0.0
        %vm650 = vcmp.gt.f32.partialorder %v560, 0.0
        %vm651 = vcmp.gt.f32.partialorder %v565, 0.0
        %vm652 = vcmp.gt.f32.partialorder %v570, 0.0
        %vm653 = vcmp.gt.f32.partialorder %v575, 0.0
        %vm654 = vcmp.gt.f32.partialorder %v580, 0.0
        %vm655 = vcmp.gt.f32.partialorder %v585, 0.0
        %vm656 = vcmp.gt.f32.partialorder %v590, 0.0
        %vm657 = vcmp.gt.f32.partialorder %v595, 0.0
        %vm658 = vcmp.gt.f32.partialorder %v600, 0.0
        %vm659 = vcmp.gt.f32.partialorder %v605, 0.0
        %vm660 = vcmp.gt.f32.partialorder %v610, 0.0
        %vm661 = vcmp.gt.f32.partialorder %v615, 0.0
        %vm662 = vcmp.gt.f32.partialorder %v620, 0.0
        %vm663 = vcmp.gt.f32.partialorder %v625, 0.0
        %vm664 = vcmp.gt.f32.partialorder %v630, 0.0
        %v665 = vmul.f32 %v475, 0.01
        %v666 = vmul.f32 %v480, 0.01
        %v667 = vmul.f32 %v485, 0.01
        %v668 = vmul.f32 %v490, 0.01
        %v669 = vmul.f32 %v495, 0.01
        %v670 = vmul.f32 %v500, 0.01
        %v671 = vmul.f32 %v505, 0.01
        %v672 = vmul.f32 %v510, 0.01
        %v673 = vmul.f32 %v515, 0.01
        %v674 = vmul.f32 %v520, 0.01
        %v675 = vmul.f32 %v525, 0.01
        %v676 = vmul.f32 %v530, 0.01
        %v677 = vmul.f32 %v535, 0.01
        %v678 = vmul.f32 %v540, 0.01
        %v679 = vmul.f32 %v545, 0.01
        %v680 = vmul.f32 %v550, 0.01
        %v681 = vmul.f32 %v555, 0.01
        %v682 = vmul.f32 %v560, 0.01
        %v683 = vmul.f32 %v565, 0.01
        %v684 = vmul.f32 %v570, 0.01
        %v685 = vmul.f32 %v575, 0.01
        %v686 = vmul.f32 %v580, 0.01
        %v687 = vmul.f32 %v585, 0.01
        %v688 = vmul.f32 %v590, 0.01
        %v689 = vmul.f32 %v595, 0.01
        %v690 = vmul.f32 %v600, 0.01
        %v691 = vmul.f32 %v605, 0.01
        %v692 = vmul.f32 %v610, 0.01
        %v693 = vmul.f32 %v615, 0.01
        %v694 = vmul.f32 %v620, 0.01
        %v695 = vmul.f32 %v625, 0.01
        %v696 = vmul.f32 %v630, 0.01
        %v697 = vsel %vm633, %v475, %v665
        %v698 = vsel %vm634, %v480, %v666
        %v699 = vsel %vm635, %v485, %v667
        %v700 = vsel %vm636, %v490, %v668
        %v701 = vsel %vm637, %v495, %v669
        %v702 = vsel %vm638, %v500, %v670
        %v703 = vsel %vm639, %v505, %v671
        %v704 = vsel %vm640, %v510, %v672
        %v705 = vsel %vm641, %v515, %v673
        %v706 = vsel %vm642, %v520, %v674
        %v707 = vsel %vm643, %v525, %v675
        %v708 = vsel %vm644, %v530, %v676
        %v709 = vsel %vm645, %v535, %v677
        %v710 = vsel %vm646, %v540, %v678
        %v711 = vsel %vm647, %v545, %v679
        %v712 = vsel %vm648, %v550, %v680
        %v713 = vsel %vm649, %v555, %v681
        %v714 = vsel %vm650, %v560, %v682
        %v715 = vsel %vm651, %v565, %v683
        %v716 = vsel %vm652, %v570, %v684
        %v717 = vsel %vm653, %v575, %v685
        %v718 = vsel %vm654, %v580, %v686
        %v719 = vsel %vm655, %v585, %v687
        %v720 = vsel %vm656, %v590, %v688
        %v721 = vsel %vm657, %v595, %v689
        %v722 = vsel %vm658, %v600, %v690
        %v723 = vsel %vm659, %v605, %v691
        %v724 = vsel %vm660, %v610, %v692
        %v725 = vsel %vm661, %v615, %v693
        %v726 = vsel %vm662, %v620, %v694
        %v727 = vsel %vm663, %v625, %v695
        %v728 = vsel %vm664, %v630, %v696
        %v729 = vld [vmem:[%s3] sm:$0xff]
        %v730 = vld [vmem:[%s3 + $0x8] sm:$0xff]
        %v731 = vld [vmem:[%s3 + $0x10] sm:$0xff]
        %v732 = vld [vmem:[%s3 + $0x18] sm:$0xff]
        %v733 = vld [vmem:[%s3 + $0x20] sm:$0xff]
        %v734 = vld [vmem:[%s3 + $0x28] sm:$0xff]
        %v735 = vld [vmem:[%s3 + $0x30] sm:$0xff]
        %v736 = vld [vmem:[%s3 + $0x38] sm:$0xff]
        %v737 = vld [vmem:[%s4] sm:$0x1]
        %v739 = vlaneseq
        %v740 = vshrl.u32 %v739, 7
        %v741 = vsub.s32 0, %v740
        %v742 = vrot.slane %v737, %v741
        %vm744 = vcmask 523264
        %v746 = vsel %vm744, %v697, 0
        %v749 = vsel %vm744, %v698, 0
        %v752 = vsel %vm744, %v699, 0
        %v755 = vsel %vm744, %v700, 0
        %v758 = vsel %vm744, %v701, 0
        %v761 = vsel %vm744, %v702, 0
        %v764 = vsel %vm744, %v703, 0
        %v767 = vsel %vm744, %v704, 0
        %v770 = vsel %vm744, %v705, 0
        %v773 = vsel %vm744, %v706, 0
        %v776 = vsel %vm744, %v707, 0
        %v779 = vsel %vm744, %v708, 0
        %v782 = vsel %vm744, %v709, 0
        %v785 = vsel %vm744, %v710, 0
        %v788 = vsel %vm744, %v711, 0
        %v791 = vsel %vm744, %v712, 0
        %v794 = vsel %vm744, %v713, 0
        %v797 = vsel %vm744, %v714, 0
        %v800 = vsel %vm744, %v715, 0
        %v803 = vsel %vm744, %v716, 0
        %v806 = vsel %vm744, %v717, 0
        %v809 = vsel %vm744, %v718, 0
        %v812 = vsel %vm744, %v719, 0
        %v815 = vsel %vm744, %v720, 0
        %v818 = vsel %vm744, %v721, 0
        %v821 = vsel %vm744, %v722, 0
        %v824 = vsel %vm744, %v723, 0
        %v827 = vsel %vm744, %v724, 0
        %v830 = vsel %vm744, %v725, 0
        %v833 = vsel %vm744, %v726, 0
        %v836 = vsel %vm744, %v727, 0
        %v839 = vsel %vm744, %v728, 0
        %841 = vmatprep.subr.mxu0 0.0
        %842 = vmatpush1.msra.mxu0 %v729
        %843 = vmatprep.subr.mxu0 0.0
        %844 = vmatpush1.msra.mxu0 %v730
        %845 = vmatprep.subr.mxu0 0.0
        %846 = vmatpush1.msra.mxu0 %v731
        %847 = vmatprep.subr.mxu0 0.0
        %848 = vmatpush1.msra.mxu0 %v732
        %849 = vmatprep.subr.mxu0 0.0
        %850 = vmatpush1.msra.mxu0 %v733
        %851 = vmatprep.subr.mxu0 0.0
        %852 = vmatpush1.msra.mxu0 %v734
        %853 = vmatprep.subr.mxu0 0.0
        %854 = vmatpush1.msra.mxu0 %v735
        %855 = vmatprep.subr.mxu0 0.0
        %856 = vmatpush1.msra.mxu0 %v736
        %857 = vmatprep.subr.mxu0 0.0
        %858 = vmatpush1.msra.mxu0 0.0
        %859 = vmatprep.subr.mxu0 0.0
        %860 = vmatpush1.msra.mxu0 0.0
        %861 = vmatprep.subr.mxu0 0.0
        %862 = vmatpush1.msra.mxu0 0.0
        %863 = vmatprep.subr.mxu0 0.0
        %864 = vmatpush1.msra.mxu0 0.0
        %865 = vmatprep.subr.mxu0 0.0
        %866 = vmatpush1.msra.mxu0 0.0
        %867 = vmatprep.subr.mxu0 0.0
        %868 = vmatpush1.msra.mxu0 0.0
        %869 = vmatprep.subr.mxu0 0.0
        %870 = vmatpush1.msra.mxu0 0.0
        %871 = vmatprep.subr.mxu0 0.0
        %872 = vmatpush1.msra.mxu0 0.0
        %873 = vmatprep.subr.mxu0 0.0
        %874 = vmatpush1.msra.mxu0 0.0
        %875 = vmatprep.subr.mxu0 0.0
        %876 = vmatpush1.msra.mxu0 0.0
        %877 = vmatprep.subr.mxu0 0.0
        %878 = vmatpush1.msra.mxu0 0.0
        %879 = vmatprep.subr.mxu0 0.0
        %880 = vmatpush1.msra.mxu0 0.0
        %881 = vmatprep.subr.mxu0 0.0
        %882 = vmatpush1.msra.mxu0 0.0
        %883 = vmatprep.subr.mxu0 0.0
        %884 = vmatpush1.msra.mxu0 0.0
        %885 = vmatprep.subr.mxu0 0.0
        %886 = vmatpush1.msra.mxu0 0.0
        %887 = vmatprep.subr.mxu0 0.0
        %888 = vmatpush1.msra.mxu0 0.0
        %889 = vmatprep.subr.mxu0 0.0
        %890 = vmatpush1.msra.mxu0 0.0
        %891 = vmatprep.subr.mxu0 0.0
        %892 = vmatpush1.msra.mxu0 0.0
        %893 = vmatprep.subr.mxu0 0.0
        %894 = vmatpush1.msra.mxu0 0.0
        %895 = vmatprep.subr.mxu0 0.0
        %896 = vmatpush1.msra.mxu0 0.0
        %897 = vmatprep.subr.mxu0 0.0
        %898 = vmatpush1.msra.mxu0 0.0
        %899 = vmatprep.subr.mxu0 0.0
        %900 = vmatpush1.msra.mxu0 0.0
        %901 = vmatprep.subr.mxu0 0.0
        %902 = vmatpush1.msra.mxu0 0.0
        %903 = vmatprep.subr.mxu0 0.0
        %904 = vmatpush1.msra.mxu0 0.0
        %905 = vmatprep.mubr.f32.mxu0 0.0
        %906 = vmatmul.mubr.f32.gmra.mrb[0].mxu0 %v746
        %v907 = vpop.f32.mrb[0].mxu0
        %v908 = vadd.f32 %v742, %v907
        %v909 = vpop.f32.mrb[0].mxu0
        %910 = vmatprep.mubr.f32.mxu0 0.0
        %911 = vmatmul.mubr.f32.gmra.mrb[0].mxu0 %v749
        %v912 = vpop.f32.mrb[0].mxu0
        %v913 = vadd.f32 %v742, %v912
        %v914 = vpop.f32.mrb[0].mxu0
        %915 = vmatprep.mubr.f32.mxu0 0.0
        %916 = vmatmul.mubr.f32.gmra.mrb[0].mxu0 %v752
        %v917 = vpop.f32.mrb[0].mxu0
        %v918 = vadd.f32 %v742, %v917
        %v919 = vpop.f32.mrb[0].mxu0
        %920 = vmatprep.mubr.f32.mxu0 0.0
        %921 = vmatmul.mubr.f32.gmra.mrb[0].mxu0 %v755
        %v922 = vpop.f32.mrb[0].mxu0
        %v923 = vadd.f32 %v742, %v922
        %v924 = vpop.f32.mrb[0].mxu0
        %925 = vmatprep.mubr.f32.mxu0 0.0
        %926 = vmatmul.mubr.f32.gmra.mrb[0].mxu0 %v758
        %v927 = vpop.f32.mrb[0].mxu0
        %v928 = vadd.f32 %v742, %v927
        %v929 = vpop.f32.mrb[0].mxu0
        %930 = vmatprep.mubr.f32.mxu0 0.0
        %931 = vmatmul.mubr.f32.gmra.mrb[0].mxu0 %v761
        %v932 = vpop.f32.mrb[0].mxu0
        %v933 = vadd.f32 %v742, %v932
        %v934 = vpop.f32.mrb[0].mxu0
        %935 = vmatprep.mubr.f32.mxu0 0.0
        %936 = vmatmul.mubr.f32.gmra.mrb[0].mxu0 %v764
        %v937 = vpop.f32.mrb[0].mxu0
        %v938 = vadd.f32 %v742, %v937
        %v939 = vpop.f32.mrb[0].mxu0
        %940 = vmatprep.mubr.f32.mxu0 0.0
        %941 = vmatmul.mubr.f32.gmra.mrb[0].mxu0 %v767
        %v942 = vpop.f32.mrb[0].mxu0
        %v943 = vadd.f32 %v742, %v942
        %v944 = vpop.f32.mrb[0].mxu0
        %945 = vmatprep.mubr.f32.mxu0 0.0
        %946 = vmatmul.mubr.f32.gmra.mrb[0].mxu0 %v770
        %v947 = vpop.f32.mrb[0].mxu0
        %v948 = vadd.f32 %v742, %v947
        %v949 = vpop.f32.mrb[0].mxu0
        %950 = vmatprep.mubr.f32.mxu0 0.0
        %951 = vmatmul.mubr.f32.gmra.mrb[0].mxu0 %v773
        %v952 = vpop.f32.mrb[0].mxu0
        %v953 = vadd.f32 %v742, %v952
        %v954 = vpop.f32.mrb[0].mxu0
        %955 = vmatprep.mubr.f32.mxu0 0.0
        %956 = vmatmul.mubr.f32.gmra.mrb[0].mxu0 %v776
        %v957 = vpop.f32.mrb[0].mxu0
        %v958 = vadd.f32 %v742, %v957
        %v959 = vpop.f32.mrb[0].mxu0
        %960 = vmatprep.mubr.f32.mxu0 0.0
        %961 = vmatmul.mubr.f32.gmra.mrb[0].mxu0 %v779
        %v962 = vpop.f32.mrb[0].mxu0
        %v963 = vadd.f32 %v742, %v962
        %v964 = vpop.f32.mrb[0].mxu0
        %965 = vmatprep.mubr.f32.mxu0 0.0
        %966 = vmatmul.mubr.f32.gmra.mrb[0].mxu0 %v782
        %v967 = vpop.f32.mrb[0].mxu0
        %v968 = vadd.f32 %v742, %v967
        %v969 = vpop.f32.mrb[0].mxu0
        %970 = vmatprep.mubr.f32.mxu0 0.0
        %971 = vmatmul.mubr.f32.gmra.mrb[0].mxu0 %v785
        %v972 = vpop.f32.mrb[0].mxu0
        %v973 = vadd.f32 %v742, %v972
        %v974 = vpop.f32.mrb[0].mxu0
        %975 = vmatprep.mubr.f32.mxu0 0.0
        %976 = vmatmul.mubr.f32.gmra.mrb[0].mxu0 %v788
        %v977 = vpop.f32.mrb[0].mxu0
        %v978 = vadd.f32 %v742, %v977
        %v979 = vpop.f32.mrb[0].mxu0
        %980 = vmatprep.mubr.f32.mxu0 0.0
        %981 = vmatmul.mubr.f32.gmra.mrb[0].mxu0 %v791
        %v982 = vpop.f32.mrb[0].mxu0
        %v983 = vadd.f32 %v742, %v982
        %v984 = vpop.f32.mrb[0].mxu0
        %985 = vmatprep.mubr.f32.mxu0 0.0
        %986 = vmatmul.mubr.f32.gmra.mrb[0].mxu0 %v794
        %v987 = vpop.f32.mrb[0].mxu0
        %v988 = vadd.f32 %v742, %v987
        %v989 = vpop.f32.mrb[0].mxu0
        %990 = vmatprep.mubr.f32.mxu0 0.0
        %991 = vmatmul.mubr.f32.gmra.mrb[0].mxu0 %v797
        %v992 = vpop.f32.mrb[0].mxu0
        %v993 = vadd.f32 %v742, %v992
        %v994 = vpop.f32.mrb[0].mxu0
        %995 = vmatprep.mubr.f32.mxu0 0.0
        %996 = vmatmul.mubr.f32.gmra.mrb[0].mxu0 %v800
        %v997 = vpop.f32.mrb[0].mxu0
        %v998 = vadd.f32 %v742, %v997
        %v999 = vpop.f32.mrb[0].mxu0
        %1000 = vmatprep.mubr.f32.mxu0 0.0
        %1001 = vmatmul.mubr.f32.gmra.mrb[0].mxu0 %v803
        %v1002 = vpop.f32.mrb[0].mxu0
        %v1003 = vadd.f32 %v742, %v1002
        %v1004 = vpop.f32.mrb[0].mxu0
        %1005 = vmatprep.mubr.f32.mxu0 0.0
        %1006 = vmatmul.mubr.f32.gmra.mrb[0].mxu0 %v806
        %v1007 = vpop.f32.mrb[0].mxu0
        %v1008 = vadd.f32 %v742, %v1007
        %v1009 = vpop.f32.mrb[0].mxu0
        %1010 = vmatprep.mubr.f32.mxu0 0.0
        %1011 = vmatmul.mubr.f32.gmra.mrb[0].mxu0 %v809
        %v1012 = vpop.f32.mrb[0].mxu0
        %v1013 = vadd.f32 %v742, %v1012
        %v1014 = vpop.f32.mrb[0].mxu0
        %1015 = vmatprep.mubr.f32.mxu0 0.0
        %1016 = vmatmul.mubr.f32.gmra.mrb[0].mxu0 %v812
        %v1017 = vpop.f32.mrb[0].mxu0
        %v1018 = vadd.f32 %v742, %v1017
        %v1019 = vpop.f32.mrb[0].mxu0
        %1020 = vmatprep.mubr.f32.mxu0 0.0
        %1021 = vmatmul.mubr.f32.gmra.mrb[0].mxu0 %v815
        %v1022 = vpop.f32.mrb[0].mxu0
        %v1023 = vadd.f32 %v742, %v1022
        %v1024 = vpop.f32.mrb[0].mxu0
        %1025 = vmatprep.mubr.f32.mxu0 0.0
        %1026 = vmatmul.mubr.f32.gmra.mrb[0].mxu0 %v818
        %v1027 = vpop.f32.mrb[0].mxu0
        %v1028 = vadd.f32 %v742, %v1027
        %v1029 = vpop.f32.mrb[0].mxu0
        %1030 = vmatprep.mubr.f32.mxu0 0.0
        %1031 = vmatmul.mubr.f32.gmra.mrb[0].mxu0 %v821
        %v1032 = vpop.f32.mrb[0].mxu0
        %v1033 = vadd.f32 %v742, %v1032
        %v1034 = vpop.f32.mrb[0].mxu0
        %1035 = vmatprep.mubr.f32.mxu0 0.0
        %1036 = vmatmul.mubr.f32.gmra.mrb[0].mxu0 %v824
        %v1037 = vpop.f32.mrb[0].mxu0
        %v1038 = vadd.f32 %v742, %v1037
        %v1039 = vpop.f32.mrb[0].mxu0
        %1040 = vmatprep.mubr.f32.mxu0 0.0
        %1041 = vmatmul.mubr.f32.gmra.mrb[0].mxu0 %v827
        %v1042 = vpop.f32.mrb[0].mxu0
        %v1043 = vadd.f32 %v742, %v1042
        %v1044 = vpop.f32.mrb[0].mxu0
        %1045 = vmatprep.mubr.f32.mxu0 0.0
        %1046 = vmatmul.mubr.f32.gmra.mrb[0].mxu0 %v830
        %v1047 = vpop.f32.mrb[0].mxu0
        %v1048 = vadd.f32 %v742, %v1047
        %v1049 = vpop.f32.mrb[0].mxu0
        %1050 = vmatprep.mubr.f32.mxu0 0.0
        %1051 = vmatmul.mubr.f32.gmra.mrb[0].mxu0 %v833
        %v1052 = vpop.f32.mrb[0].mxu0
        %v1053 = vadd.f32 %v742, %v1052
        %v1054 = vpop.f32.mrb[0].mxu0
        %1055 = vmatprep.mubr.f32.mxu0 0.0
        %1056 = vmatmul.mubr.f32.gmra.mrb[0].mxu0 %v836
        %v1057 = vpop.f32.mrb[0].mxu0
        %v1058 = vadd.f32 %v742, %v1057
        %v1059 = vpop.f32.mrb[0].mxu0
        %1060 = vmatprep.mubr.f32.mxu0 0.0
        %1061 = vmatmul.mubr.f32.gmra.mrb[0].mxu0 %v839
        %v1062 = vpop.f32.mrb[0].mxu0
        %v1063 = vadd.f32 %v742, %v1062
        %v1064 = vpop.f32.mrb[0].mxu0
        %1065 = vdwg.mxu0
        %vm1066 = vcmp.gt.f32.partialorder %v908, 0.0
        %vm1067 = vcmp.gt.f32.partialorder %v913, 0.0
        %vm1068 = vcmp.gt.f32.partialorder %v918, 0.0
        %vm1069 = vcmp.gt.f32.partialorder %v923, 0.0
        %vm1070 = vcmp.gt.f32.partialorder %v928, 0.0
        %vm1071 = vcmp.gt.f32.partialorder %v933, 0.0
        %vm1072 = vcmp.gt.f32.partialorder %v938, 0.0
        %vm1073 = vcmp.gt.f32.partialorder %v943, 0.0
        %vm1074 = vcmp.gt.f32.partialorder %v948, 0.0
        %vm1075 = vcmp.gt.f32.partialorder %v953, 0.0
        %vm1076 = vcmp.gt.f32.partialorder %v958, 0.0
        %vm1077 = vcmp.gt.f32.partialorder %v963, 0.0
        %vm1078 = vcmp.gt.f32.partialorder %v968, 0.0
        %vm1079 = vcmp.gt.f32.partialorder %v973, 0.0
        %vm1080 = vcmp.gt.f32.partialorder %v978, 0.0
        %vm1081 = vcmp.gt.f32.partialorder %v983, 0.0
        %vm1082 = vcmp.gt.f32.partialorder %v988, 0.0
        %vm1083 = vcmp.gt.f32.partialorder %v993, 0.0
        %vm1084 = vcmp.gt.f32.partialorder %v998, 0.0
        %vm1085 = vcmp.gt.f32.partialorder %v1003, 0.0
        %vm1086 = vcmp.gt.f32.partialorder %v1008, 0.0
        %vm1087 = vcmp.gt.f32.partialorder %v1013, 0.0
        %vm1088 = vcmp.gt.f32.partialorder %v1018, 0.0
        %vm1089 = vcmp.gt.f32.partialorder %v1023, 0.0
        %vm1090 = vcmp.gt.f32.partialorder %v1028, 0.0
        %vm1091 = vcmp.gt.f32.partialorder %v1033, 0.0
        %vm1092 = vcmp.gt.f32.partialorder %v1038, 0.0
        %vm1093 = vcmp.gt.f32.partialorder %v1043, 0.0
        %vm1094 = vcmp.gt.f32.partialorder %v1048, 0.0
        %vm1095 = vcmp.gt.f32.partialorder %v1053, 0.0
        %vm1096 = vcmp.gt.f32.partialorder %v1058, 0.0
        %vm1097 = vcmp.gt.f32.partialorder %v1063, 0.0
        %v1098 = vmul.f32 %v908, 0.01
        %v1099 = vmul.f32 %v913, 0.01
        %v1100 = vmul.f32 %v918, 0.01
        %v1101 = vmul.f32 %v923, 0.01
        %v1102 = vmul.f32 %v928, 0.01
        %v1103 = vmul.f32 %v933, 0.01
        %v1104 = vmul.f32 %v938, 0.01
        %v1105 = vmul.f32 %v943, 0.01
        %v1106 = vmul.f32 %v948, 0.01
        %v1107 = vmul.f32 %v953, 0.01
        %v1108 = vmul.f32 %v958, 0.01
        %v1109 = vmul.f32 %v963, 0.01
        %v1110 = vmul.f32 %v968, 0.01
        %v1111 = vmul.f32 %v973, 0.01
        %v1112 = vmul.f32 %v978, 0.01
        %v1113 = vmul.f32 %v983, 0.01
        %v1114 = vmul.f32 %v988, 0.01
        %v1115 = vmul.f32 %v993, 0.01
        %v1116 = vmul.f32 %v998, 0.01
        %v1117 = vmul.f32 %v1003, 0.01
        %v1118 = vmul.f32 %v1008, 0.01
        %v1119 = vmul.f32 %v1013, 0.01
        %v1120 = vmul.f32 %v1018, 0.01
        %v1121 = vmul.f32 %v1023, 0.01
        %v1122 = vmul.f32 %v1028, 0.01
        %v1123 = vmul.f32 %v1033, 0.01
        %v1124 = vmul.f32 %v1038, 0.01
        %v1125 = vmul.f32 %v1043, 0.01
        %v1126 = vmul.f32 %v1048, 0.01
        %v1127 = vmul.f32 %v1053, 0.01
        %v1128 = vmul.f32 %v1058, 0.01
        %v1129 = vmul.f32 %v1063, 0.01
        %v1130 = vsel %vm1066, %v908, %v1098
        %v1131 = vsel %vm1067, %v913, %v1099
        %v1132 = vsel %vm1068, %v918, %v1100
        %v1133 = vsel %vm1069, %v923, %v1101
        %v1134 = vsel %vm1070, %v928, %v1102
        %v1135 = vsel %vm1071, %v933, %v1103
        %v1136 = vsel %vm1072, %v938, %v1104
        %v1137 = vsel %vm1073, %v943, %v1105
        %v1138 = vsel %vm1074, %v948, %v1106
        %v1139 = vsel %vm1075, %v953, %v1107
        %v1140 = vsel %vm1076, %v958, %v1108
        %v1141 = vsel %vm1077, %v963, %v1109
        %v1142 = vsel %vm1078, %v968, %v1110
        %v1143 = vsel %vm1079, %v973, %v1111
        %v1144 = vsel %vm1080, %v978, %v1112
        %v1145 = vsel %vm1081, %v983, %v1113
        %v1146 = vsel %vm1082, %v988, %v1114
        %v1147 = vsel %vm1083, %v993, %v1115
        %v1148 = vsel %vm1084, %v998, %v1116
        %v1149 = vsel %vm1085, %v1003, %v1117
        %v1150 = vsel %vm1086, %v1008, %v1118
        %v1151 = vsel %vm1087, %v1013, %v1119
        %v1152 = vsel %vm1088, %v1018, %v1120
        %v1153 = vsel %vm1089, %v1023, %v1121
        %v1154 = vsel %vm1090, %v1028, %v1122
        %v1155 = vsel %vm1091, %v1033, %v1123
        %v1156 = vsel %vm1092, %v1038, %v1124
        %v1157 = vsel %vm1093, %v1043, %v1125
        %v1158 = vsel %vm1094, %v1048, %v1126
        %v1159 = vsel %vm1095, %v1053, %v1127
        %v1160 = vsel %vm1096, %v1058, %v1128
        %v1161 = vsel %vm1097, %v1063, %v1129
        %v1162 = vld [vmem:[%s5] sm:$0xff]
        %v1163 = vld [vmem:[%s5 + $0x8] sm:$0xff]
        %v1164 = vld [vmem:[%s6] sm:$0x1]
        %v1166 = vlaneseq
        %v1167 = vshrl.u32 %v1166, 7
        %v1168 = vsub.s32 0, %v1167
        %v1169 = vrot.slane %v1164, %v1168
        %vm1171 = vcmask 130048
        %v1173 = vsel %vm1171, %v1130, 0
        %v1176 = vsel %vm1171, %v1131, 0
        %v1179 = vsel %vm1171, %v1132, 0
        %v1182 = vsel %vm1171, %v1133, 0
        %v1185 = vsel %vm1171, %v1134, 0
        %v1188 = vsel %vm1171, %v1135, 0
        %v1191 = vsel %vm1171, %v1136, 0
        %v1194 = vsel %vm1171, %v1137, 0
        %v1197 = vsel %vm1171, %v1138, 0
        %v1200 = vsel %vm1171, %v1139, 0
        %v1203 = vsel %vm1171, %v1140, 0
        %v1206 = vsel %vm1171, %v1141, 0
        %v1209 = vsel %vm1171, %v1142, 0
        %v1212 = vsel %vm1171, %v1143, 0
        %v1215 = vsel %vm1171, %v1144, 0
        %v1218 = vsel %vm1171, %v1145, 0
        %v1221 = vsel %vm1171, %v1146, 0
        %v1224 = vsel %vm1171, %v1147, 0
        %v1227 = vsel %vm1171, %v1148, 0
        %v1230 = vsel %vm1171, %v1149, 0
        %v1233 = vsel %vm1171, %v1150, 0
        %v1236 = vsel %vm1171, %v1151, 0
        %v1239 = vsel %vm1171, %v1152, 0
        %v1242 = vsel %vm1171, %v1153, 0
        %v1245 = vsel %vm1171, %v1154, 0
        %v1248 = vsel %vm1171, %v1155, 0
        %v1251 = vsel %vm1171, %v1156, 0
        %v1254 = vsel %vm1171, %v1157, 0
        %v1257 = vsel %vm1171, %v1158, 0
        %v1260 = vsel %vm1171, %v1159, 0
        %v1263 = vsel %vm1171, %v1160, 0
        %v1266 = vsel %vm1171, %v1161, 0
        %1268 = vmatprep.subr.mxu0 0.0
        %1269 = vmatpush1.msra.mxu0 %v1162
        %1270 = vmatprep.subr.mxu0 0.0
        %1271 = vmatpush1.msra.mxu0 %v1163
        %1272 = vmatprep.subr.mxu0 0.0
        %1273 = vmatpush1.msra.mxu0 0.0
        %1274 = vmatprep.subr.mxu0 0.0
        %1275 = vmatpush1.msra.mxu0 0.0
        %1276 = vmatprep.subr.mxu0 0.0
        %1277 = vmatpush1.msra.mxu0 0.0
        %1278 = vmatprep.subr.mxu0 0.0
        %1279 = vmatpush1.msra.mxu0 0.0
        %1280 = vmatprep.subr.mxu0 0.0
        %1281 = vmatpush1.msra.mxu0 0.0
        %1282 = vmatprep.subr.mxu0 0.0
        %1283 = vmatpush1.msra.mxu0 0.0
        %1284 = vmatprep.subr.mxu0 0.0
        %1285 = vmatpush1.msra.mxu0 0.0
        %1286 = vmatprep.subr.mxu0 0.0
        %1287 = vmatpush1.msra.mxu0 0.0
        %1288 = vmatprep.subr.mxu0 0.0
        %1289 = vmatpush1.msra.mxu0 0.0
        %1290 = vmatprep.subr.mxu0 0.0
        %1291 = vmatpush1.msra.mxu0 0.0
        %1292 = vmatprep.subr.mxu0 0.0
        %1293 = vmatpush1.msra.mxu0 0.0
        %1294 = vmatprep.subr.mxu0 0.0
        %1295 = vmatpush1.msra.mxu0 0.0
        %1296 = vmatprep.subr.mxu0 0.0
        %1297 = vmatpush1.msra.mxu0 0.0
        %1298 = vmatprep.subr.mxu0 0.0
        %1299 = vmatpush1.msra.mxu0 0.0
        %1300 = vmatprep.subr.mxu0 0.0
        %1301 = vmatpush1.msra.mxu0 0.0
        %1302 = vmatprep.subr.mxu0 0.0
        %1303 = vmatpush1.msra.mxu0 0.0
        %1304 = vmatprep.subr.mxu0 0.0
        %1305 = vmatpush1.msra.mxu0 0.0
        %1306 = vmatprep.subr.mxu0 0.0
        %1307 = vmatpush1.msra.mxu0 0.0
        %1308 = vmatprep.subr.mxu0 0.0
        %1309 = vmatpush1.msra.mxu0 0.0
        %1310 = vmatprep.subr.mxu0 0.0
        %1311 = vmatpush1.msra.mxu0 0.0
        %1312 = vmatprep.subr.mxu0 0.0
        %1313 = vmatpush1.msra.mxu0 0.0
        %1314 = vmatprep.subr.mxu0 0.0
        %1315 = vmatpush1.msra.mxu0 0.0
        %1316 = vmatprep.subr.mxu0 0.0
        %1317 = vmatpush1.msra.mxu0 0.0
        %1318 = vmatprep.subr.mxu0 0.0
        %1319 = vmatpush1.msra.mxu0 0.0
        %1320 = vmatprep.subr.mxu0 0.0
        %1321 = vmatpush1.msra.mxu0 0.0
        %1322 = vmatprep.subr.mxu0 0.0
        %1323 = vmatpush1.msra.mxu0 0.0
        %1324 = vmatprep.subr.mxu0 0.0
        %1325 = vmatpush1.msra.mxu0 0.0
        %1326 = vmatprep.subr.mxu0 0.0
        %1327 = vmatpush1.msra.mxu0 0.0
        %1328 = vmatprep.subr.mxu0 0.0
        %1329 = vmatpush1.msra.mxu0 0.0
        %1330 = vmatprep.subr.mxu0 0.0
        %1331 = vmatpush1.msra.mxu0 0.0
        %1332 = vmatprep.mubr.f32.mxu0 0.0
        %1333 = vmatmul.mubr.f32.gmra.mrb[0].mxu0 %v1173
        %v1334 = vpop.f32.mrb[0].mxu0
        %v1335 = vadd.f32 %v1169, %v1334
        %v1336 = vpop.f32.mrb[0].mxu0
        %1337 = vmatprep.mubr.f32.mxu0 0.0
        %1338 = vmatmul.mubr.f32.gmra.mrb[0].mxu0 %v1176
        %v1339 = vpop.f32.mrb[0].mxu0
        %v1340 = vadd.f32 %v1169, %v1339
        %v1341 = vpop.f32.mrb[0].mxu0
        %1342 = vmatprep.mubr.f32.mxu0 0.0
        %1343 = vmatmul.mubr.f32.gmra.mrb[0].mxu0 %v1179
        %v1344 = vpop.f32.mrb[0].mxu0
        %v1345 = vadd.f32 %v1169, %v1344
        %v1346 = vpop.f32.mrb[0].mxu0
        %1347 = vmatprep.mubr.f32.mxu0 0.0
        %1348 = vmatmul.mubr.f32.gmra.mrb[0].mxu0 %v1182
        %v1349 = vpop.f32.mrb[0].mxu0
        %v1350 = vadd.f32 %v1169, %v1349
        %v1351 = vpop.f32.mrb[0].mxu0
        %1352 = vmatprep.mubr.f32.mxu0 0.0
        %1353 = vmatmul.mubr.f32.gmra.mrb[0].mxu0 %v1185
        %v1354 = vpop.f32.mrb[0].mxu0
        %v1355 = vadd.f32 %v1169, %v1354
        %v1356 = vpop.f32.mrb[0].mxu0
        %1357 = vmatprep.mubr.f32.mxu0 0.0
        %1358 = vmatmul.mubr.f32.gmra.mrb[0].mxu0 %v1188
        %v1359 = vpop.f32.mrb[0].mxu0
        %v1360 = vadd.f32 %v1169, %v1359
        %v1361 = vpop.f32.mrb[0].mxu0
        %1362 = vmatprep.mubr.f32.mxu0 0.0
        %1363 = vmatmul.mubr.f32.gmra.mrb[0].mxu0 %v1191
        %v1364 = vpop.f32.mrb[0].mxu0
        %v1365 = vadd.f32 %v1169, %v1364
        %v1366 = vpop.f32.mrb[0].mxu0
        %1367 = vmatprep.mubr.f32.mxu0 0.0
        %1368 = vmatmul.mubr.f32.gmra.mrb[0].mxu0 %v1194
        %v1369 = vpop.f32.mrb[0].mxu0
        %v1370 = vadd.f32 %v1169, %v1369
        %v1371 = vpop.f32.mrb[0].mxu0
        %1372 = vmatprep.mubr.f32.mxu0 0.0
        %1373 = vmatmul.mubr.f32.gmra.mrb[0].mxu0 %v1197
        %v1374 = vpop.f32.mrb[0].mxu0
        %v1375 = vadd.f32 %v1169, %v1374
        %v1376 = vpop.f32.mrb[0].mxu0
        %1377 = vmatprep.mubr.f32.mxu0 0.0
        %1378 = vmatmul.mubr.f32.gmra.mrb[0].mxu0 %v1200
        %v1379 = vpop.f32.mrb[0].mxu0
        %v1380 = vadd.f32 %v1169, %v1379
        %v1381 = vpop.f32.mrb[0].mxu0
        %1382 = vmatprep.mubr.f32.mxu0 0.0
        %1383 = vmatmul.mubr.f32.gmra.mrb[0].mxu0 %v1203
        %v1384 = vpop.f32.mrb[0].mxu0
        %v1385 = vadd.f32 %v1169, %v1384
        %v1386 = vpop.f32.mrb[0].mxu0
        %1387 = vmatprep.mubr.f32.mxu0 0.0
        %1388 = vmatmul.mubr.f32.gmra.mrb[0].mxu0 %v1206
        %v1389 = vpop.f32.mrb[0].mxu0
        %v1390 = vadd.f32 %v1169, %v1389
        %v1391 = vpop.f32.mrb[0].mxu0
        %1392 = vmatprep.mubr.f32.mxu0 0.0
        %1393 = vmatmul.mubr.f32.gmra.mrb[0].mxu0 %v1209
        %v1394 = vpop.f32.mrb[0].mxu0
        %v1395 = vadd.f32 %v1169, %v1394
        %v1396 = vpop.f32.mrb[0].mxu0
        %1397 = vmatprep.mubr.f32.mxu0 0.0
        %1398 = vmatmul.mubr.f32.gmra.mrb[0].mxu0 %v1212
        %v1399 = vpop.f32.mrb[0].mxu0
        %v1400 = vadd.f32 %v1169, %v1399
        %v1401 = vpop.f32.mrb[0].mxu0
        %1402 = vmatprep.mubr.f32.mxu0 0.0
        %1403 = vmatmul.mubr.f32.gmra.mrb[0].mxu0 %v1215
        %v1404 = vpop.f32.mrb[0].mxu0
        %v1405 = vadd.f32 %v1169, %v1404
        %v1406 = vpop.f32.mrb[0].mxu0
        %1407 = vmatprep.mubr.f32.mxu0 0.0
        %1408 = vmatmul.mubr.f32.gmra.mrb[0].mxu0 %v1218
        %v1409 = vpop.f32.mrb[0].mxu0
        %v1410 = vadd.f32 %v1169, %v1409
        %v1411 = vpop.f32.mrb[0].mxu0
        %1412 = vmatprep.mubr.f32.mxu0 0.0
        %1413 = vmatmul.mubr.f32.gmra.mrb[0].mxu0 %v1221
        %v1414 = vpop.f32.mrb[0].mxu0
        %v1415 = vadd.f32 %v1169, %v1414
        %v1416 = vpop.f32.mrb[0].mxu0
        %1417 = vmatprep.mubr.f32.mxu0 0.0
        %1418 = vmatmul.mubr.f32.gmra.mrb[0].mxu0 %v1224
        %v1419 = vpop.f32.mrb[0].mxu0
        %v1420 = vadd.f32 %v1169, %v1419
        %v1421 = vpop.f32.mrb[0].mxu0
        %1422 = vmatprep.mubr.f32.mxu0 0.0
        %1423 = vmatmul.mubr.f32.gmra.mrb[0].mxu0 %v1227
        %v1424 = vpop.f32.mrb[0].mxu0
        %v1425 = vadd.f32 %v1169, %v1424
        %v1426 = vpop.f32.mrb[0].mxu0
        %1427 = vmatprep.mubr.f32.mxu0 0.0
        %1428 = vmatmul.mubr.f32.gmra.mrb[0].mxu0 %v1230
        %v1429 = vpop.f32.mrb[0].mxu0
        %v1430 = vadd.f32 %v1169, %v1429
        %v1431 = vpop.f32.mrb[0].mxu0
        %1432 = vmatprep.mubr.f32.mxu0 0.0
        %1433 = vmatmul.mubr.f32.gmra.mrb[0].mxu0 %v1233
        %v1434 = vpop.f32.mrb[0].mxu0
        %v1435 = vadd.f32 %v1169, %v1434
        %v1436 = vpop.f32.mrb[0].mxu0
        %1437 = vmatprep.mubr.f32.mxu0 0.0
        %1438 = vmatmul.mubr.f32.gmra.mrb[0].mxu0 %v1236
        %v1439 = vpop.f32.mrb[0].mxu0
        %v1440 = vadd.f32 %v1169, %v1439
        %v1441 = vpop.f32.mrb[0].mxu0
        %1442 = vmatprep.mubr.f32.mxu0 0.0
        %1443 = vmatmul.mubr.f32.gmra.mrb[0].mxu0 %v1239
        %v1444 = vpop.f32.mrb[0].mxu0
        %v1445 = vadd.f32 %v1169, %v1444
        %v1446 = vpop.f32.mrb[0].mxu0
        %1447 = vmatprep.mubr.f32.mxu0 0.0
        %1448 = vmatmul.mubr.f32.gmra.mrb[0].mxu0 %v1242
        %v1449 = vpop.f32.mrb[0].mxu0
        %v1450 = vadd.f32 %v1169, %v1449
        %v1451 = vpop.f32.mrb[0].mxu0
        %1452 = vmatprep.mubr.f32.mxu0 0.0
        %1453 = vmatmul.mubr.f32.gmra.mrb[0].mxu0 %v1245
        %v1454 = vpop.f32.mrb[0].mxu0
        %v1455 = vadd.f32 %v1169, %v1454
        %v1456 = vpop.f32.mrb[0].mxu0
        %1457 = vmatprep.mubr.f32.mxu0 0.0
        %1458 = vmatmul.mubr.f32.gmra.mrb[0].mxu0 %v1248
        %v1459 = vpop.f32.mrb[0].mxu0
        %v1460 = vadd.f32 %v1169, %v1459
        %v1461 = vpop.f32.mrb[0].mxu0
        %1462 = vmatprep.mubr.f32.mxu0 0.0
        %1463 = vmatmul.mubr.f32.gmra.mrb[0].mxu0 %v1251
        %v1464 = vpop.f32.mrb[0].mxu0
        %v1465 = vadd.f32 %v1169, %v1464
        %v1466 = vpop.f32.mrb[0].mxu0
        %1467 = vmatprep.mubr.f32.mxu0 0.0
        %1468 = vmatmul.mubr.f32.gmra.mrb[0].mxu0 %v1254
        %v1469 = vpop.f32.mrb[0].mxu0
        %v1470 = vadd.f32 %v1169, %v1469
        %v1471 = vpop.f32.mrb[0].mxu0
        %1472 = vmatprep.mubr.f32.mxu0 0.0
        %1473 = vmatmul.mubr.f32.gmra.mrb[0].mxu0 %v1257
        %v1474 = vpop.f32.mrb[0].mxu0
        %v1475 = vadd.f32 %v1169, %v1474
        %v1476 = vpop.f32.mrb[0].mxu0
        %1477 = vmatprep.mubr.f32.mxu0 0.0
        %1478 = vmatmul.mubr.f32.gmra.mrb[0].mxu0 %v1260
        %v1479 = vpop.f32.mrb[0].mxu0
        %v1480 = vadd.f32 %v1169, %v1479
        %v1481 = vpop.f32.mrb[0].mxu0
        %1482 = vmatprep.mubr.f32.mxu0 0.0
        %1483 = vmatmul.mubr.f32.gmra.mrb[0].mxu0 %v1263
        %v1484 = vpop.f32.mrb[0].mxu0
        %v1485 = vadd.f32 %v1169, %v1484
        %v1486 = vpop.f32.mrb[0].mxu0
        %1487 = vmatprep.mubr.f32.mxu0 0.0
        %1488 = vmatmul.mubr.f32.gmra.mrb[0].mxu0 %v1266
        %v1489 = vpop.f32.mrb[0].mxu0
        %v1490 = vadd.f32 %v1169, %v1489
        %v1491 = vpop.f32.mrb[0].mxu0
        %1492 = vdwg.mxu0
        %vm1493 = vcmp.gt.f32.partialorder %v1335, 0.0
        %vm1494 = vcmp.gt.f32.partialorder %v1340, 0.0
        %vm1495 = vcmp.gt.f32.partialorder %v1345, 0.0
        %vm1496 = vcmp.gt.f32.partialorder %v1350, 0.0
        %vm1497 = vcmp.gt.f32.partialorder %v1355, 0.0
        %vm1498 = vcmp.gt.f32.partialorder %v1360, 0.0
        %vm1499 = vcmp.gt.f32.partialorder %v1365, 0.0
        %vm1500 = vcmp.gt.f32.partialorder %v1370, 0.0
        %vm1501 = vcmp.gt.f32.partialorder %v1375, 0.0
        %vm1502 = vcmp.gt.f32.partialorder %v1380, 0.0
        %vm1503 = vcmp.gt.f32.partialorder %v1385, 0.0
        %vm1504 = vcmp.gt.f32.partialorder %v1390, 0.0
        %vm1505 = vcmp.gt.f32.partialorder %v1395, 0.0
        %vm1506 = vcmp.gt.f32.partialorder %v1400, 0.0
        %vm1507 = vcmp.gt.f32.partialorder %v1405, 0.0
        %vm1508 = vcmp.gt.f32.partialorder %v1410, 0.0
        %vm1509 = vcmp.gt.f32.partialorder %v1415, 0.0
        %vm1510 = vcmp.gt.f32.partialorder %v1420, 0.0
        %vm1511 = vcmp.gt.f32.partialorder %v1425, 0.0
        %vm1512 = vcmp.gt.f32.partialorder %v1430, 0.0
        %vm1513 = vcmp.gt.f32.partialorder %v1435, 0.0
        %vm1514 = vcmp.gt.f32.partialorder %v1440, 0.0
        %vm1515 = vcmp.gt.f32.partialorder %v1445, 0.0
        %vm1516 = vcmp.gt.f32.partialorder %v1450, 0.0
        %vm1517 = vcmp.gt.f32.partialorder %v1455, 0.0
        %vm1518 = vcmp.gt.f32.partialorder %v1460, 0.0
        %vm1519 = vcmp.gt.f32.partialorder %v1465, 0.0
        %vm1520 = vcmp.gt.f32.partialorder %v1470, 0.0
        %vm1521 = vcmp.gt.f32.partialorder %v1475, 0.0
        %vm1522 = vcmp.gt.f32.partialorder %v1480, 0.0
        %vm1523 = vcmp.gt.f32.partialorder %v1485, 0.0
        %vm1524 = vcmp.gt.f32.partialorder %v1490, 0.0
        %v1525 = vmul.f32 %v1335, 0.01
        %v1526 = vmul.f32 %v1340, 0.01
        %v1527 = vmul.f32 %v1345, 0.01
        %v1528 = vmul.f32 %v1350, 0.01
        %v1529 = vmul.f32 %v1355, 0.01
        %v1530 = vmul.f32 %v1360, 0.01
        %v1531 = vmul.f32 %v1365, 0.01
        %v1532 = vmul.f32 %v1370, 0.01
        %v1533 = vmul.f32 %v1375, 0.01
        %v1534 = vmul.f32 %v1380, 0.01
        %v1535 = vmul.f32 %v1385, 0.01
        %v1536 = vmul.f32 %v1390, 0.01
        %v1537 = vmul.f32 %v1395, 0.01
        %v1538 = vmul.f32 %v1400, 0.01
        %v1539 = vmul.f32 %v1405, 0.01
        %v1540 = vmul.f32 %v1410, 0.01
        %v1541 = vmul.f32 %v1415, 0.01
        %v1542 = vmul.f32 %v1420, 0.01
        %v1543 = vmul.f32 %v1425, 0.01
        %v1544 = vmul.f32 %v1430, 0.01
        %v1545 = vmul.f32 %v1435, 0.01
        %v1546 = vmul.f32 %v1440, 0.01
        %v1547 = vmul.f32 %v1445, 0.01
        %v1548 = vmul.f32 %v1450, 0.01
        %v1549 = vmul.f32 %v1455, 0.01
        %v1550 = vmul.f32 %v1460, 0.01
        %v1551 = vmul.f32 %v1465, 0.01
        %v1552 = vmul.f32 %v1470, 0.01
        %v1553 = vmul.f32 %v1475, 0.01
        %v1554 = vmul.f32 %v1480, 0.01
        %v1555 = vmul.f32 %v1485, 0.01
        %v1556 = vmul.f32 %v1490, 0.01
        %v1557 = vsel %vm1493, %v1335, %v1525
        %v1558 = vsel %vm1494, %v1340, %v1526
        %v1559 = vsel %vm1495, %v1345, %v1527
        %v1560 = vsel %vm1496, %v1350, %v1528
        %v1561 = vsel %vm1497, %v1355, %v1529
        %v1562 = vsel %vm1498, %v1360, %v1530
        %v1563 = vsel %vm1499, %v1365, %v1531
        %v1564 = vsel %vm1500, %v1370, %v1532
        %v1565 = vsel %vm1501, %v1375, %v1533
        %v1566 = vsel %vm1502, %v1380, %v1534
        %v1567 = vsel %vm1503, %v1385, %v1535
        %v1568 = vsel %vm1504, %v1390, %v1536
        %v1569 = vsel %vm1505, %v1395, %v1537
        %v1570 = vsel %vm1506, %v1400, %v1538
        %v1571 = vsel %vm1507, %v1405, %v1539
        %v1572 = vsel %vm1508, %v1410, %v1540
        %v1573 = vsel %vm1509, %v1415, %v1541
        %v1574 = vsel %vm1510, %v1420, %v1542
        %v1575 = vsel %vm1511, %v1425, %v1543
        %v1576 = vsel %vm1512, %v1430, %v1544
        %v1577 = vsel %vm1513, %v1435, %v1545
        %v1578 = vsel %vm1514, %v1440, %v1546
        %v1579 = vsel %vm1515, %v1445, %v1547
        %v1580 = vsel %vm1516, %v1450, %v1548
        %v1581 = vsel %vm1517, %v1455, %v1549
        %v1582 = vsel %vm1518, %v1460, %v1550
        %v1583 = vsel %vm1519, %v1465, %v1551
        %v1584 = vsel %vm1520, %v1470, %v1552
        %v1585 = vsel %vm1521, %v1475, %v1553
        %v1586 = vsel %vm1522, %v1480, %v1554
        %v1587 = vsel %vm1523, %v1485, %v1555
        %v1588 = vsel %vm1524, %v1490, %v1556
        %v1589 = vld [vmem:[%s7] sm:$0xff]
        %v1590 = vld [vmem:[%s7 + $0x8] sm:$0xff]
        %v1591 = vld [vmem:[%s7 + $0x10] sm:$0xff]
        %v1592 = vld [vmem:[%s7 + $0x18] sm:$0xff]
        %v1593 = vld [vmem:[%s7 + $0x20] sm:$0xff]
        %v1594 = vld [vmem:[%s7 + $0x28] sm:$0xff]
        %v1595 = vld [vmem:[%s7 + $0x30] sm:$0xff]
        %v1596 = vld [vmem:[%s7 + $0x38] sm:$0xff]
        %v1597 = vld [vmem:[%s8] sm:$0x1]
        %v1599 = vlaneseq
        %v1600 = vshrl.u32 %v1599, 7
        %v1601 = vsub.s32 0, %v1600
        %v1602 = vrot.slane %v1597, %v1601
        %v1605 = vsel %vm744, %v1557, 0
        %v1608 = vsel %vm744, %v1558, 0
        %v1611 = vsel %vm744, %v1559, 0
        %v1614 = vsel %vm744, %v1560, 0
        %v1617 = vsel %vm744, %v1561, 0
        %v1620 = vsel %vm744, %v1562, 0
        %v1623 = vsel %vm744, %v1563, 0
        %v1626 = vsel %vm744, %v1564, 0
        %v1629 = vsel %vm744, %v1565, 0
        %v1632 = vsel %vm744, %v1566, 0
        %v1635 = vsel %vm744, %v1567, 0
        %v1638 = vsel %vm744, %v1568, 0
        %v1641 = vsel %vm744, %v1569, 0
        %v1644 = vsel %vm744, %v1570, 0
        %v1647 = vsel %vm744, %v1571, 0
        %v1650 = vsel %vm744, %v1572, 0
        %v1653 = vsel %vm744, %v1573, 0
        %v1656 = vsel %vm744, %v1574, 0
        %v1659 = vsel %vm744, %v1575, 0
        %v1662 = vsel %vm744, %v1576, 0
        %v1665 = vsel %vm744, %v1577, 0
        %v1668 = vsel %vm744, %v1578, 0
        %v1671 = vsel %vm744, %v1579, 0
        %v1674 = vsel %vm744, %v1580, 0
        %v1677 = vsel %vm744, %v1581, 0
        %v1680 = vsel %vm744, %v1582, 0
        %v1683 = vsel %vm744, %v1583, 0
        %v1686 = vsel %vm744, %v1584, 0
        %v1689 = vsel %vm744, %v1585, 0
        %v1692 = vsel %vm744, %v1586, 0
        %v1695 = vsel %vm744, %v1587, 0
        %v1698 = vsel %vm744, %v1588, 0
        %1700 = vmatprep.subr.mxu0 0.0
        %1701 = vmatpush1.msra.mxu0 %v1589
        %1702 = vmatprep.subr.mxu0 0.0
        %1703 = vmatpush1.msra.mxu0 %v1590
        %1704 = vmatprep.subr.mxu0 0.0
        %1705 = vmatpush1.msra.mxu0 %v1591
        %1706 = vmatprep.subr.mxu0 0.0
        %1707 = vmatpush1.msra.mxu0 %v1592
        %1708 = vmatprep.subr.mxu0 0.0
        %1709 = vmatpush1.msra.mxu0 %v1593
        %1710 = vmatprep.subr.mxu0 0.0
        %1711 = vmatpush1.msra.mxu0 %v1594
        %1712 = vmatprep.subr.mxu0 0.0
        %1713 = vmatpush1.msra.mxu0 %v1595
        %1714 = vmatprep.subr.mxu0 0.0
        %1715 = vmatpush1.msra.mxu0 %v1596
        %1716 = vmatprep.subr.mxu0 0.0
        %1717 = vmatpush1.msra.mxu0 0.0
        %1718 = vmatprep.subr.mxu0 0.0
        %1719 = vmatpush1.msra.mxu0 0.0
        %1720 = vmatprep.subr.mxu0 0.0
        %1721 = vmatpush1.msra.mxu0 0.0
        %1722 = vmatprep.subr.mxu0 0.0
        %1723 = vmatpush1.msra.mxu0 0.0
        %1724 = vmatprep.subr.mxu0 0.0
        %1725 = vmatpush1.msra.mxu0 0.0
        %1726 = vmatprep.subr.mxu0 0.0
        %1727 = vmatpush1.msra.mxu0 0.0
        %1728 = vmatprep.subr.mxu0 0.0
        %1729 = vmatpush1.msra.mxu0 0.0
        %1730 = vmatprep.subr.mxu0 0.0
        %1731 = vmatpush1.msra.mxu0 0.0
        %1732 = vmatprep.subr.mxu0 0.0
        %1733 = vmatpush1.msra.mxu0 0.0
        %1734 = vmatprep.subr.mxu0 0.0
        %1735 = vmatpush1.msra.mxu0 0.0
        %1736 = vmatprep.subr.mxu0 0.0
        %1737 = vmatpush1.msra.mxu0 0.0
        %1738 = vmatprep.subr.mxu0 0.0
        %1739 = vmatpush1.msra.mxu0 0.0
        %1740 = vmatprep.subr.mxu0 0.0
        %1741 = vmatpush1.msra.mxu0 0.0
        %1742 = vmatprep.subr.mxu0 0.0
        %1743 = vmatpush1.msra.mxu0 0.0
        %1744 = vmatprep.subr.mxu0 0.0
        %1745 = vmatpush1.msra.mxu0 0.0
        %1746 = vmatprep.subr.mxu0 0.0
        %1747 = vmatpush1.msra.mxu0 0.0
        %1748 = vmatprep.subr.mxu0 0.0
        %1749 = vmatpush1.msra.mxu0 0.0
        %1750 = vmatprep.subr.mxu0 0.0
        %1751 = vmatpush1.msra.mxu0 0.0
        %1752 = vmatprep.subr.mxu0 0.0
        %1753 = vmatpush1.msra.mxu0 0.0
        %1754 = vmatprep.subr.mxu0 0.0
        %1755 = vmatpush1.msra.mxu0 0.0
        %1756 = vmatprep.subr.mxu0 0.0
        %1757 = vmatpush1.msra.mxu0 0.0
        %1758 = vmatprep.subr.mxu0 0.0
        %1759 = vmatpush1.msra.mxu0 0.0
        %1760 = vmatprep.subr.mxu0 0.0
        %1761 = vmatpush1.msra.mxu0 0.0
        %1762 = vmatprep.subr.mxu0 0.0
        %1763 = vmatpush1.msra.mxu0 0.0
        %1764 = vmatprep.mubr.f32.mxu0 0.0
        %1765 = vmatmul.mubr.f32.gmra.mrb[0].mxu0 %v1605
        %v1766 = vpop.f32.mrb[0].mxu0
        %v1767 = vadd.f32 %v1602, %v1766
        %v1768 = vpop.f32.mrb[0].mxu0
        %1769 = vmatprep.mubr.f32.mxu0 0.0
        %1770 = vmatmul.mubr.f32.gmra.mrb[0].mxu0 %v1608
        %v1771 = vpop.f32.mrb[0].mxu0
        %v1772 = vadd.f32 %v1602, %v1771
        %v1773 = vpop.f32.mrb[0].mxu0
        %1774 = vmatprep.mubr.f32.mxu0 0.0
        %1775 = vmatmul.mubr.f32.gmra.mrb[0].mxu0 %v1611
        %v1776 = vpop.f32.mrb[0].mxu0
        %v1777 = vadd.f32 %v1602, %v1776
        %v1778 = vpop.f32.mrb[0].mxu0
        %1779 = vmatprep.mubr.f32.mxu0 0.0
        %1780 = vmatmul.mubr.f32.gmra.mrb[0].mxu0 %v1614
        %v1781 = vpop.f32.mrb[0].mxu0
        %v1782 = vadd.f32 %v1602, %v1781
        %v1783 = vpop.f32.mrb[0].mxu0
        %1784 = vmatprep.mubr.f32.mxu0 0.0
        %1785 = vmatmul.mubr.f32.gmra.mrb[0].mxu0 %v1617
        %v1786 = vpop.f32.mrb[0].mxu0
        %v1787 = vadd.f32 %v1602, %v1786
        %v1788 = vpop.f32.mrb[0].mxu0
        %1789 = vmatprep.mubr.f32.mxu0 0.0
        %1790 = vmatmul.mubr.f32.gmra.mrb[0].mxu0 %v1620
        %v1791 = vpop.f32.mrb[0].mxu0
        %v1792 = vadd.f32 %v1602, %v1791
        %v1793 = vpop.f32.mrb[0].mxu0
        %1794 = vmatprep.mubr.f32.mxu0 0.0
        %1795 = vmatmul.mubr.f32.gmra.mrb[0].mxu0 %v1623
        %v1796 = vpop.f32.mrb[0].mxu0
        %v1797 = vadd.f32 %v1602, %v1796
        %v1798 = vpop.f32.mrb[0].mxu0
        %1799 = vmatprep.mubr.f32.mxu0 0.0
        %1800 = vmatmul.mubr.f32.gmra.mrb[0].mxu0 %v1626
        %v1801 = vpop.f32.mrb[0].mxu0
        %v1802 = vadd.f32 %v1602, %v1801
        %v1803 = vpop.f32.mrb[0].mxu0
        %1804 = vmatprep.mubr.f32.mxu0 0.0
        %1805 = vmatmul.mubr.f32.gmra.mrb[0].mxu0 %v1629
        %v1806 = vpop.f32.mrb[0].mxu0
        %v1807 = vadd.f32 %v1602, %v1806
        %v1808 = vpop.f32.mrb[0].mxu0
        %1809 = vmatprep.mubr.f32.mxu0 0.0
        %1810 = vmatmul.mubr.f32.gmra.mrb[0].mxu0 %v1632
        %v1811 = vpop.f32.mrb[0].mxu0
        %v1812 = vadd.f32 %v1602, %v1811
        %v1813 = vpop.f32.mrb[0].mxu0
        %1814 = vmatprep.mubr.f32.mxu0 0.0
        %1815 = vmatmul.mubr.f32.gmra.mrb[0].mxu0 %v1635
        %v1816 = vpop.f32.mrb[0].mxu0
        %v1817 = vadd.f32 %v1602, %v1816
        %v1818 = vpop.f32.mrb[0].mxu0
        %1819 = vmatprep.mubr.f32.mxu0 0.0
        %1820 = vmatmul.mubr.f32.gmra.mrb[0].mxu0 %v1638
        %v1821 = vpop.f32.mrb[0].mxu0
        %v1822 = vadd.f32 %v1602, %v1821
        %v1823 = vpop.f32.mrb[0].mxu0
        %1824 = vmatprep.mubr.f32.mxu0 0.0
        %1825 = vmatmul.mubr.f32.gmra.mrb[0].mxu0 %v1641
        %v1826 = vpop.f32.mrb[0].mxu0
        %v1827 = vadd.f32 %v1602, %v1826
        %v1828 = vpop.f32.mrb[0].mxu0
        %1829 = vmatprep.mubr.f32.mxu0 0.0
        %1830 = vmatmul.mubr.f32.gmra.mrb[0].mxu0 %v1644
        %v1831 = vpop.f32.mrb[0].mxu0
        %v1832 = vadd.f32 %v1602, %v1831
        %v1833 = vpop.f32.mrb[0].mxu0
        %1834 = vmatprep.mubr.f32.mxu0 0.0
        %1835 = vmatmul.mubr.f32.gmra.mrb[0].mxu0 %v1647
        %v1836 = vpop.f32.mrb[0].mxu0
        %v1837 = vadd.f32 %v1602, %v1836
        %v1838 = vpop.f32.mrb[0].mxu0
        %1839 = vmatprep.mubr.f32.mxu0 0.0
        %1840 = vmatmul.mubr.f32.gmra.mrb[0].mxu0 %v1650
        %v1841 = vpop.f32.mrb[0].mxu0
        %v1842 = vadd.f32 %v1602, %v1841
        %v1843 = vpop.f32.mrb[0].mxu0
        %1844 = vmatprep.mubr.f32.mxu0 0.0
        %1845 = vmatmul.mubr.f32.gmra.mrb[0].mxu0 %v1653
        %v1846 = vpop.f32.mrb[0].mxu0
        %v1847 = vadd.f32 %v1602, %v1846
        %v1848 = vpop.f32.mrb[0].mxu0
        %1849 = vmatprep.mubr.f32.mxu0 0.0
        %1850 = vmatmul.mubr.f32.gmra.mrb[0].mxu0 %v1656
        %v1851 = vpop.f32.mrb[0].mxu0
        %v1852 = vadd.f32 %v1602, %v1851
        %v1853 = vpop.f32.mrb[0].mxu0
        %1854 = vmatprep.mubr.f32.mxu0 0.0
        %1855 = vmatmul.mubr.f32.gmra.mrb[0].mxu0 %v1659
        %v1856 = vpop.f32.mrb[0].mxu0
        %v1857 = vadd.f32 %v1602, %v1856
        %v1858 = vpop.f32.mrb[0].mxu0
        %1859 = vmatprep.mubr.f32.mxu0 0.0
        %1860 = vmatmul.mubr.f32.gmra.mrb[0].mxu0 %v1662
        %v1861 = vpop.f32.mrb[0].mxu0
        %v1862 = vadd.f32 %v1602, %v1861
        %v1863 = vpop.f32.mrb[0].mxu0
        %1864 = vmatprep.mubr.f32.mxu0 0.0
        %1865 = vmatmul.mubr.f32.gmra.mrb[0].mxu0 %v1665
        %v1866 = vpop.f32.mrb[0].mxu0
        %v1867 = vadd.f32 %v1602, %v1866
        %v1868 = vpop.f32.mrb[0].mxu0
        %1869 = vmatprep.mubr.f32.mxu0 0.0
        %1870 = vmatmul.mubr.f32.gmra.mrb[0].mxu0 %v1668
        %v1871 = vpop.f32.mrb[0].mxu0
        %v1872 = vadd.f32 %v1602, %v1871
        %v1873 = vpop.f32.mrb[0].mxu0
        %1874 = vmatprep.mubr.f32.mxu0 0.0
        %1875 = vmatmul.mubr.f32.gmra.mrb[0].mxu0 %v1671
        %v1876 = vpop.f32.mrb[0].mxu0
        %v1877 = vadd.f32 %v1602, %v1876
        %v1878 = vpop.f32.mrb[0].mxu0
        %1879 = vmatprep.mubr.f32.mxu0 0.0
        %1880 = vmatmul.mubr.f32.gmra.mrb[0].mxu0 %v1674
        %v1881 = vpop.f32.mrb[0].mxu0
        %v1882 = vadd.f32 %v1602, %v1881
        %v1883 = vpop.f32.mrb[0].mxu0
        %1884 = vmatprep.mubr.f32.mxu0 0.0
        %1885 = vmatmul.mubr.f32.gmra.mrb[0].mxu0 %v1677
        %v1886 = vpop.f32.mrb[0].mxu0
        %v1887 = vadd.f32 %v1602, %v1886
        %v1888 = vpop.f32.mrb[0].mxu0
        %1889 = vmatprep.mubr.f32.mxu0 0.0
        %1890 = vmatmul.mubr.f32.gmra.mrb[0].mxu0 %v1680
        %v1891 = vpop.f32.mrb[0].mxu0
        %v1892 = vadd.f32 %v1602, %v1891
        %v1893 = vpop.f32.mrb[0].mxu0
        %1894 = vmatprep.mubr.f32.mxu0 0.0
        %1895 = vmatmul.mubr.f32.gmra.mrb[0].mxu0 %v1683
        %v1896 = vpop.f32.mrb[0].mxu0
        %v1897 = vadd.f32 %v1602, %v1896
        %v1898 = vpop.f32.mrb[0].mxu0
        %1899 = vmatprep.mubr.f32.mxu0 0.0
        %1900 = vmatmul.mubr.f32.gmra.mrb[0].mxu0 %v1686
        %v1901 = vpop.f32.mrb[0].mxu0
        %v1902 = vadd.f32 %v1602, %v1901
        %v1903 = vpop.f32.mrb[0].mxu0
        %1904 = vmatprep.mubr.f32.mxu0 0.0
        %1905 = vmatmul.mubr.f32.gmra.mrb[0].mxu0 %v1689
        %v1906 = vpop.f32.mrb[0].mxu0
        %v1907 = vadd.f32 %v1602, %v1906
        %v1908 = vpop.f32.mrb[0].mxu0
        %1909 = vmatprep.mubr.f32.mxu0 0.0
        %1910 = vmatmul.mubr.f32.gmra.mrb[0].mxu0 %v1692
        %v1911 = vpop.f32.mrb[0].mxu0
        %v1912 = vadd.f32 %v1602, %v1911
        %v1913 = vpop.f32.mrb[0].mxu0
        %1914 = vmatprep.mubr.f32.mxu0 0.0
        %1915 = vmatmul.mubr.f32.gmra.mrb[0].mxu0 %v1695
        %v1916 = vpop.f32.mrb[0].mxu0
        %v1917 = vadd.f32 %v1602, %v1916
        %v1918 = vpop.f32.mrb[0].mxu0
        %1919 = vmatprep.mubr.f32.mxu0 0.0
        %1920 = vmatmul.mubr.f32.gmra.mrb[0].mxu0 %v1698
        %v1921 = vpop.f32.mrb[0].mxu0
        %v1922 = vadd.f32 %v1602, %v1921
        %v1923 = vpop.f32.mrb[0].mxu0
        %1924 = vdwg.mxu0
        %1925 = vst [vmem:[%s350] sm:$0xff] %v1767
        %1926 = vst [vmem:[%s350 + $0x8] sm:$0xff] %v1772
        %1927 = vst [vmem:[%s350 + $0x10] sm:$0xff] %v1777
        %1928 = vst [vmem:[%s350 + $0x18] sm:$0xff] %v1782
        %1929 = vst [vmem:[%s350 + $0x20] sm:$0xff] %v1787
        %1930 = vst [vmem:[%s350 + $0x28] sm:$0xff] %v1792
        %1931 = vst [vmem:[%s350 + $0x30] sm:$0xff] %v1797
        %1932 = vst [vmem:[%s350 + $0x38] sm:$0xff] %v1802
        %1933 = vst [vmem:[%s350 + $0x40] sm:$0xff] %v1807
        %1934 = vst [vmem:[%s350 + $0x48] sm:$0xff] %v1812
        %1935 = vst [vmem:[%s350 + $0x50] sm:$0xff] %v1817
        %1936 = vst [vmem:[%s350 + $0x58] sm:$0xff] %v1822
        %1937 = vst [vmem:[%s350 + $0x60] sm:$0xff] %v1827
        %1938 = vst [vmem:[%s350 + $0x68] sm:$0xff] %v1832
        %1939 = vst [vmem:[%s350 + $0x70] sm:$0xff] %v1837
        %1940 = vst [vmem:[%s350 + $0x78] sm:$0xff] %v1842
        %1941 = vst [vmem:[%s350 + $0x80] sm:$0xff] %v1847
        %1942 = vst [vmem:[%s350 + $0x88] sm:$0xff] %v1852
        %1943 = vst [vmem:[%s350 + $0x90] sm:$0xff] %v1857
        %1944 = vst [vmem:[%s350 + $0x98] sm:$0xff] %v1862
        %1945 = vst [vmem:[%s350 + $0xa0] sm:$0xff] %v1867
        %1946 = vst [vmem:[%s350 + $0xa8] sm:$0xff] %v1872
        %1947 = vst [vmem:[%s350 + $0xb0] sm:$0xff] %v1877
        %1948 = vst [vmem:[%s350 + $0xb8] sm:$0xff] %v1882
        %1949 = vst [vmem:[%s350 + $0xc0] sm:$0xff] %v1887
        %1950 = vst [vmem:[%s350 + $0xc8] sm:$0xff] %v1892
        %1951 = vst [vmem:[%s350 + $0xd0] sm:$0xff] %v1897
        %1952 = vst [vmem:[%s350 + $0xd8] sm:$0xff] %v1902
        %1953 = vst [vmem:[%s350 + $0xe0] sm:$0xff] %v1907
        %1954 = vst [vmem:[%s350 + $0xe8] sm:$0xff] %v1912
        %1955 = vst [vmem:[%s350 + $0xf0] sm:$0xff] %v1917
        %1956 = vst [vmem:[%s350 + $0xf8] sm:$0xff] %v1922
        %s1957 = sand.u32 %s228, 1
        %s1958 = scalar_lea.sflag [#allocation4], %s1957
        %s1959 = sand.u32 %s228, 1
        %s1960 = smul.addr %s1959, 256
        %s1961 = scalar_lea.vmem [#allocation5], %s1960
        // Predicated region
        $region61: #{simple_autoencoder_forward.1} parent=55 // pred_check
          %p1962 = pneg %p238
        $region62: #{simple_autoencoder_forward.1} parent=55 // pred_check_branch
          %1964 = sbr.rel (%p1962) target = $region64
        $region63: #{simple_autoencoder_forward.1} parent=55 // pred_region
          %s1965 = smul.u32 32, %s26
          %s1967 = ssub.s32 4096, 4096
          %1968 = vsyncadd %s1958, %s1967
          %s1969 = smul.addr %s1965, 128
          %s1970 = scalar_lea.hbm %s9, %s1969
          %s1971 = sshll.u32 %s1961, 4
          %s1972 = int_to_ptr.vmem [resolvable:$true] %s1971
          %1977 = dma.vmem_to_hbm [thread:$0]  %s1972, 4096, %s1970, %s1958, 128, 128, 8
        $region64: #{simple_autoencoder_forward.1} parent=55 // pred_fallthru
          _
      $region56: #{simple_autoencoder_forward.1} parent=5 // pred_fallthru
        _
      %p1978 = scmp.le.s32.totalorder 2, %s21
      // Predicated region
      $region65: #{simple_autoencoder_forward.1} parent=5 // pred_check
        %p1979 = pneg %p1978
      $region66: #{simple_autoencoder_forward.1} parent=5 // pred_check_branch
        %1981 = sbr.rel (%p1979) target = $region68
      $region67: #{simple_autoencoder_forward.1} parent=5 // pred_region
        %s1982 = ssub.s32 %s21, 2
        // Predicated region
        $region69: #{simple_autoencoder_forward.1} parent=67 // pred_check
          %p1983 = pneg %p244
        $region70: #{simple_autoencoder_forward.1} parent=67 // pred_check_branch
          %1985 = sbr.rel (%p1983) target = $region72
        $region71: #{simple_autoencoder_forward.1} parent=67 // pred_region
          %s1986 = sand.u32 %s229, 1
          %s1987 = scalar_lea.sflag [#allocation4], %s1986
          %s1988 = sand.u32 %s229, 1
          %s1989 = smul.addr %s1988, 256
          %s1990 = scalar_lea.vmem [#allocation5], %s1989
          %1991 = dma.done %s1987, 4096
        $region72: #{simple_autoencoder_forward.1} parent=67 // pred_fallthru
          _
      $region68: #{simple_autoencoder_forward.1} parent=5 // pred_fallthru
        _
    $region6: #{simple_autoencoder_forward.1} parent=1 // loop_footer
      %s25 = sadd.s32 1, %s21
    $region7: #{simple_autoencoder_forward.1} parent=1 // loop_footer_branch
      %20 = sbr.rel target = $region3
    $region8: #{simple_autoencoder_forward.1} parent=1 // loop_exit
      _
    %1992 = vsyncpa [#allocation3], 1
    %s1993 = scalar_lea.sflag [#allocation3], 1
    %1994 = vsyncpa %s1993, 1
    %1995 = vsyncpa [#allocation4], 1
    %s1996 = scalar_lea.sflag [#allocation4], 1
    %1997 = vsyncpa %s1996, 1

</llo_original>
